<compile_context>
chip_gen: v7x
topology: tpu7x:2x2x1
jax: 0.10.0
libtpu: 0.0.40
codegen_flags: <defaults>
</compile_context>

<pallas_src>
import numpy as np
import jax
import jax.numpy as jnp
from jax import lax
from jax.experimental import pallas as pl
from jax.experimental.pallas import tpu as pltpu


# ---------------------------------------------------------------------------
# Layer configuration straight from the PyTorch spec.
#   (Cin, Cout, K, stride, pad, apply_leaky_relu)
# NOTE: nn.Conv2d(padding=P) pads BOTH spatial dims by P; since the kernel width
# is 1, the period axis grows by 2*P per layer (reproduced exactly here).
# ---------------------------------------------------------------------------
def layer_configs(kernel_size=5, stride=3):
    return [
        (1,   32,  kernel_size, stride, 2, True),
        (32,  64,  kernel_size, stride, 2, True),
        (64,  128, kernel_size, stride, 2, True),
        (128, 256, kernel_size, stride, 2, True),
        (256, 512, kernel_size, stride, 2, True),
        (512, 1,   3,           1,      1, False),   # postnet (no activation)
    ]


def _round_up(x, m):
    return ((x + m - 1) // m) * m


# ---------------------------------------------------------------------------
# Pallas kernel: fused (space-to-depth) conv + bias + LeakyReLU for one tile of
# sequences.
#   x_ref : (T_s, Hq_p, Cp)        input tile, channels-last depth rows
#   w_ref : (KD, Cp, Cout_p)       fused weights (one (Cp,Cout) matrix per tap)
#   b_ref : (1, Cout_p)            bias (f32)
#   o_ref : (T_s * H_out_p, Cout_p)
# ---------------------------------------------------------------------------
def _make_conv_kernel(KD, H_out_p, T_s, Cp, Cout_p, neg_slope, apply_act):
    M = T_s * H_out_p

    def kernel(x_ref, w_ref, b_ref, o_ref):
        # Tap 0 initializes the accumulator (no zero-init / RMW epilogue pass).
        x0 = x_ref[:, 0:H_out_p, :].reshape(M, Cp)
        acc = jnp.dot(x0, w_ref[0], preferred_element_type=jnp.float32)
        for d in range(1, KD):                         # static unroll, KD in {2, 3}
            xd = x_ref[:, d:d + H_out_p, :].reshape(M, Cp)
            acc = acc + jnp.dot(xd, w_ref[d], preferred_element_type=jnp.float32)
        acc = acc + b_ref[...].astype(jnp.float32)     # broadcast over rows
        if apply_act:
            acc = jnp.where(acc >= 0.0, acc, jnp.float32(neg_slope) * acc)
        o_ref[...] = acc.astype(o_ref.dtype)           # single lane-dense store

    return kernel


# ---------------------------------------------------------------------------
# One conv layer: Conv2d(kernel=(K,1), stride=(stride,1), padding=(pad,pad))
# + bias + optional LeakyReLU, on a channels-last activation.
#   X : (B, W, H, Cin)  ->  (B, W + 2*pad, H_out, Cout)
# ---------------------------------------------------------------------------
def pallas_conv_h(X, w, b, *, K, stride, pad, apply_act, neg_slope=0.1,
                  compute_dtype=jnp.float32,
                  vmem_block_budget=6 * 2**20,
                  vmem_limit_bytes=48 * 2**20):
    B, W, H, Cin = X.shape
    Cout = w.shape[0]
    assert w.shape == (Cout, Cin, K) and b.shape == (Cout,)

    H_out = (H + 2 * pad - K) // stride + 1
    W2 = W + 2 * pad
    KD = (K - 1) // stride + 1             # depth taps after space-to-depth
    Cp = stride * Cin                      # depth channels

    itemsize = jnp.dtype(compute_dtype).itemsize
    sub = 8 if itemsize >= 4 else 16       # sublane multiple for this dtype
    H_out_p = _round_up(H_out, sub)        # padded output rows (sliced off later)
    Hq_p = max(H_out_p + KD - 1, -(-(H + 2 * pad) // stride))
    Hq_p = _round_up(Hq_p, sub)
    right_pad_h = Hq_p * stride - H - pad
    assert right_pad_h >= 0

    # ---- glue: zero pads + space-to-depth (pure layout, no data duplication) ----
    Xp = jnp.pad(X.astype(compute_dtype),
                 ((0, 0), (pad, pad), (pad, right_pad_h), (0, 0)))
    S = B * W2
    Xs = Xp.reshape(S, Hq_p, Cp)           # (sequences, depth rows, stride*Cin)

    # Fused weights: W_d[r*Cin + ci, co] = w[co, ci, d*stride + r] (0 if tap >= K)
    w_t = jnp.transpose(w, (2, 1, 0)).astype(compute_dtype)        # (K, Cin, Cout)
    w_t = jnp.pad(w_t, ((0, KD * stride - K), (0, 0), (0, 0)))
    w_f = w_t.reshape(KD, Cp, Cout)

    # Lane-dense output for the 1-channel postnet: pad Cout -> 128, slice after.
    Cout_p = 128 if Cout < 8 else Cout
    if Cout_p != Cout:
        w_f = jnp.pad(w_f, ((0, 0), (0, 0), (0, Cout_p - Cout)))
        b_p = jnp.pad(b, (0, Cout_p - Cout))
    else:
        b_p = b
    b2 = b_p.astype(jnp.float32).reshape(1, Cout_p)

    # ---- sequence tiling (grid), sized from a VMEM byte budget ----
    bytes_per_seq = (Hq_p * Cp + H_out_p * Cout_p) * itemsize
    T_s = vmem_block_budget // max(1, 2 * bytes_per_seq)   # /2: double buffering
    T_s = max(8, min(512, (T_s // 8) * 8))
    T_s = min(T_s, _round_up(S, 8))
    S_pad = _round_up(S, T_s)
    if S_pad != S:
        Xs = jnp.pad(Xs, ((0, S_pad - S), (0, 0), (0, 0)))
    grid = (S_pad // T_s,)

    kernel = _make_conv_kernel(KD, H_out_p, T_s, Cp, Cout_p, neg_slope, apply_act)

    out = pl.pallas_call(
        kernel,
        out_shape=jax.ShapeDtypeStruct((S_pad * H_out_p, Cout_p), compute_dtype),
        grid=grid,
        in_specs=[
            pl.BlockSpec((T_s, Hq_p, Cp), lambda i: (i, 0, 0)),
            pl.BlockSpec((KD, Cp, Cout_p), lambda i: (0, 0, 0)),
            pl.BlockSpec((1, Cout_p), lambda i: (0, 0)),
        ],
        out_specs=pl.BlockSpec((T_s * H_out_p, Cout_p), lambda i: (i, 0)),
        compiler_params=pltpu.CompilerParams(
            dimension_semantics=("parallel",),
            vmem_limit_bytes=vmem_limit_bytes),
    )(Xs, w_f, b2)

    out = out.reshape(S_pad, H_out_p, Cout_p)[:S, :H_out, :Cout]
    return out.reshape(B, W2, H_out, Cout)


# ---------------------------------------------------------------------------
# Parameters & full forward pass
# ---------------------------------------------------------------------------
def init_params(key, kernel_size=5, stride=3):
    params = []
    for (cin, cout, k, _s, _p, _a) in layer_configs(kernel_size, stride):
        key, kw, kb = jax.random.split(key, 3)
        fan_in = cin * k                       # kernel is (k, 1)
        bound = 1.0 / np.sqrt(fan_in)
        w = jax.random.uniform(kw, (cout, cin, k), jnp.float32, -bound, bound)
        b = jax.random.uniform(kb, (cout,), jnp.float32, -bound, bound)
        params.append((w, b))
    return params


def period_discriminator_forward(x, params, period, *, kernel_size=5, stride=3,
                                 neg_slope=0.1, compute_dtype=jnp.float32):
    """x: (B, 1, L).  Returns (flat, inter_out) matching the PyTorch module."""
    B, C, L = x.shape
    n_pad = (-L) % period
    if n_pad:
        x = jnp.pad(x, ((0, 0), (0, 0), (0, n_pad)), mode="reflect")
    L2 = L + n_pad
    H, W = L2 // period, period

    # NCL -> (B, C, H, W) -> channels-last (B, W, H, C): single entry transpose.
    X = jnp.transpose(x.reshape(B, C, H, W), (0, 3, 2, 1)).astype(compute_dtype)

    inter_out = []
    for (w, b), (_ci, _co, K, s, p, act) in zip(
            params, layer_configs(kernel_size, stride)):
        X = pallas_conv_h(X, w, b, K=K, stride=s, pad=p, apply_act=act,
                          neg_slope=neg_slope, compute_dtype=compute_dtype)
        inter_out.append(jnp.transpose(X, (0, 3, 2, 1)))   # NCHW, per the interface

    post = inter_out[-1]                    # (B, 1, H', W')
    flat = post.reshape(B, -1)
    return flat, inter_out


# ---------------------------------------------------------------------------
# Pure-JAX reference (mirrors the PyTorch forward exactly) for correctness check
# ---------------------------------------------------------------------------
def _ref_conv2d(x, w, b, stride, pad, act, neg_slope):
    y = lax.conv_general_dilated(
        x, w[..., None], window_strides=(stride, 1),
        padding=[(pad, pad), (pad, pad)],
        dimension_numbers=("NCHW", "OIHW", "NCHW"),
        precision=lax.Precision.HIGHEST)
    y = y + b[None, :, None, None]
    if act:
        y = jnp.where(y >= 0, y, neg_slope * y)
    return y


def ref_forward(x, params, period, *, kernel_size=5, stride=3, neg_slope=0.1):
    B, C, L = x.shape
    n_pad = (-L) % period
    if n_pad:
        x = jnp.pad(x, ((0, 0), (0, 0), (0, n_pad)), mode="reflect")
    L2 = L + n_pad
    X = x.reshape(B, C, L2 // period, period).astype(jnp.float32)
    inter = []
    for (w, b), (_ci, _co, _k, s, p, act) in zip(
            params, layer_configs(kernel_size, stride)):
        X = _ref_conv2d(X, w, b, s, p, act, neg_slope)
        inter.append(X)
    return X.reshape(B, -1), inter


if __name__ == "__main__":
    key = jax.random.PRNGKey(0)
    key, kx, kp = jax.random.split(key, 3)

    B, L, PERIOD = 2, 250, 3      # L % period != 0 -> exercises the reflect pad
    x = jax.random.normal(kx, (B, 1, L), jnp.float32)
    params = init_params(kp)

    # f32 Pallas path
    flat, inter = period_discriminator_forward(x, params, PERIOD)
    flat = jax.block_until_ready(flat)
    for t in inter:
        jax.block_until_ready(t)

    # correctness vs pure-JAX reference
    ref_flat, ref_inter = ref_forward(x, params, PERIOD)
    np.testing.assert_allclose(np.asarray(flat), np.asarray(ref_flat),
                               rtol=3e-2, atol=5e-3)
    for a, r in zip(inter, ref_inter):
        np.testing.assert_allclose(np.asarray(a), np.asarray(r),
                                   rtol=3e-2, atol=5e-3)

    # bf16-compute path (perf knob for v6e/v7x MXU); sanity-check it runs.
    flat_bf, _ = period_discriminator_forward(x, params, PERIOD,
                                              compute_dtype=jnp.bfloat16)
    flat_bf = jax.block_until_ready(flat_bf)
    assert np.all(np.isfinite(np.asarray(flat_bf, dtype=np.float32)))

    print("KERNEL_OK")
</pallas_src>

<mosaic_0001>
module attributes {stable_mosaic.version = 11 : i64} {
  func.func @kernel(%arg0: i32, %arg1: memref<16x40x3xf32, #tpu.memory_space<vmem>>, %arg2: memref<2x3x32xf32, #tpu.memory_space<vmem>>, %arg3: memref<1x32xf32, #tpu.memory_space<vmem>>, %arg4: memref<512x32xf32, #tpu.memory_space<vmem>>) attributes {dimension_semantics = [#tpu.dimension_semantics<parallel>], iteration_bounds = array<i64: 1>, scalar_prefetch = 0 : i64, scratch_operands = 0 : i64, tpu.core_type = #tpu.core_type<tc>, window_params = [{transform_indices = @transform_0, window_bounds = array<i64: 16, 40, 3>}, {pipeline_mode = #tpu.pipeline_mode<synchronous>, transform_indices = @transform_1, window_bounds = array<i64: 2, 3, 32>}, {pipeline_mode = #tpu.pipeline_mode<synchronous>, transform_indices = @transform_2, window_bounds = array<i64: 1, 32>}, {transform_indices = @transform_3, window_bounds = array<i64: 512, 32>}]} {
    %c0 = arith.constant 0 : index
    %c0_0 = arith.constant 0 : index
    %c0_1 = arith.constant 0 : index
    %0 = vector.load %arg1[%c0, %c0_0, %c0_1] : memref<16x40x3xf32, #tpu.memory_space<vmem>>, vector<16x32x3xf32>
    %1 = vector.shape_cast %0 : vector<16x32x3xf32> to vector<512x3xf32>
    %c0_2 = arith.constant 0 : index
    %c0_3 = arith.constant 0 : index
    %c0_4 = arith.constant 0 : index
    %2 = vector.load %arg2[%c0_2, %c0_3, %c0_4] : memref<2x3x32xf32, #tpu.memory_space<vmem>>, vector<1x3x32xf32>
    %3 = vector.shape_cast %2 : vector<1x3x32xf32> to vector<3x32xf32>
    %cst = arith.constant dense<0.000000e+00> : vector<512x32xf32>
    %4 = tpu.matmul %1, %3, %cst {dimension_numbers = #tpu.dot_dimension_numbers<[1], [0], [0], [1], [0, 0, 1, 1], [], []>} : vector<512x3xf32>, vector<3x32xf32>, vector<512x32xf32> -> vector<512x32xf32>
    %c0_5 = arith.constant 0 : index
    %c1 = arith.constant 1 : index
    %c0_6 = arith.constant 0 : index
    %5 = vector.load %arg1[%c0_5, %c1, %c0_6] : memref<16x40x3xf32, #tpu.memory_space<vmem>>, vector<16x32x3xf32>
    %6 = vector.shape_cast %5 : vector<16x32x3xf32> to vector<512x3xf32>
    %c1_7 = arith.constant 1 : index
    %c0_8 = arith.constant 0 : index
    %c0_9 = arith.constant 0 : index
    %7 = vector.load %arg2[%c1_7, %c0_8, %c0_9] : memref<2x3x32xf32, #tpu.memory_space<vmem>>, vector<1x3x32xf32>
    %8 = vector.shape_cast %7 : vector<1x3x32xf32> to vector<3x32xf32>
    %cst_10 = arith.constant dense<0.000000e+00> : vector<512x32xf32>
    %9 = tpu.matmul %6, %8, %cst_10 {dimension_numbers = #tpu.dot_dimension_numbers<[1], [0], [0], [1], [0, 0, 1, 1], [], []>} : vector<512x3xf32>, vector<3x32xf32>, vector<512x32xf32> -> vector<512x32xf32>
    %10 = arith.addf %4, %9 : vector<512x32xf32>
    %c0_11 = arith.constant 0 : index
    %c0_12 = arith.constant 0 : index
    %11 = vector.load %arg3[%c0_11, %c0_12] : memref<1x32xf32, #tpu.memory_space<vmem>>, vector<1x32xf32>
    %12 = vector.broadcast %11 : vector<1x32xf32> to vector<512x32xf32>
    %13 = arith.addf %10, %12 : vector<512x32xf32>
    %cst_13 = arith.constant 0.000000e+00 : f32
    %14 = vector.broadcast %cst_13 : f32 to vector<512x32xf32>
    %15 = arith.cmpf oge, %13, %14 : vector<512x32xf32>
    %cst_14 = arith.constant 1.000000e-01 : f32
    %16 = vector.broadcast %cst_14 : f32 to vector<512x32xf32>
    %17 = arith.mulf %16, %13 : vector<512x32xf32>
    %18 = arith.select %15, %13, %17 : vector<512x32xi1>, vector<512x32xf32>
    %c0_15 = arith.constant 0 : index
    %c0_16 = arith.constant 0 : index
    %19 = vector.load %arg4[%c0_15, %c0_16] : memref<512x32xf32, #tpu.memory_space<vmem>>, vector<512x32xf32>
    tpu.vector_store %arg4[%c0_15, %c0_16], %18 {strides = array<i32>} : memref<512x32xf32, #tpu.memory_space<vmem>>, vector<512x32xf32>,
    return
  }
  func.func @transform_0(%arg0: i32) -> (i32, i32, i32) {
    %c0_i32 = arith.constant 0 : i32
    %c0_i32_0 = arith.constant 0 : i32
    %c0_i32_1 = arith.constant 0 : i32
    return %arg0, %c0_i32, %c0_i32_0 : i32, i32, i32
  }
  func.func @transform_1(%arg0: i32) -> (i32, i32, i32) {
    %c0_i32 = arith.constant 0 : i32
    %c0_i32_0 = arith.constant 0 : i32
    %c0_i32_1 = arith.constant 0 : i32
    %c0_i32_2 = arith.constant 0 : i32
    return %c0_i32, %c0_i32_0, %c0_i32_1 : i32, i32, i32
  }
  func.func @transform_2(%arg0: i32) -> (i32, i32) {
    %c0_i32 = arith.constant 0 : i32
    %c0_i32_0 = arith.constant 0 : i32
    %c0_i32_1 = arith.constant 0 : i32
    return %c0_i32, %c0_i32_0 : i32, i32
  }
  func.func @transform_3(%arg0: i32) -> (i32, i32) {
    %c0_i32 = arith.constant 0 : i32
    %c0_i32_0 = arith.constant 0 : i32
    return %arg0, %c0_i32 : i32, i32
  }
}

</mosaic_0001>

<llo_original>
// kernel: tpu_custom_call.1
$region0: #{tpu_custom_call.1}
  #allocation0 [shape = 'u32[]', space=smem, size = 0x4, offset = 0x4, fixed_abs, tag = 'smem constant byte address 0x4 - core index']
  #allocation1 [shape = 'u32[144,128]{1,0:T(1,128)}', space=vmem, size = 0x12000, scoped, tag = 'internal scratch']
  %s0 = inlined_call_operand.vmem [shape: f32[16,40,3], index: 0, kind: input, shape index: {}]
  %s1 = inlined_call_operand.vmem [shape: f32[2,3,32], index: 1, kind: input, shape index: {}]
  %s2 = inlined_call_operand.vmem [shape: f32[1,32], index: 2, kind: input, shape index: {}]
  %s3 = inlined_call_operand.vmem [shape: f32[512,32], index: 3, kind: output, shape index: {}]
  %s4 = sld [smem:[#allocation0]]
  $region22: #{tpu_custom_call.1} parent=0
    _
  %s6 = ssub.s32 1, %s4
  %s7 = scalar_select 0, %s6, %s4
  // Predicated region
  $region2: #{tpu_custom_call.1} parent=0 // pred_check
    _
  $region3: #{tpu_custom_call.1} parent=0 // pred_check_branch
    %9 = sbr.rel (0) target = $region5
  $region4: #{tpu_custom_call.1} parent=0 // pred_region
    _
  $region5: #{tpu_custom_call.1} parent=0 // pred_fallthru
    _
  // Predicated region
  $region6: #{tpu_custom_call.1} parent=0 // pred_check
    _
  $region7: #{tpu_custom_call.1} parent=0 // pred_check_branch
    %11 = sbr.rel (0) target = $region9
  $region8: #{tpu_custom_call.1} parent=0 // pred_region
    _
  $region9: #{tpu_custom_call.1} parent=0 // pred_fallthru
    _
  // Predicated region
  $region10: #{tpu_custom_call.1} parent=0 // pred_check
    _
  $region11: #{tpu_custom_call.1} parent=0 // pred_check_branch
    %13 = sbr.rel (0) target = $region13
  $region12: #{tpu_custom_call.1} parent=0 // pred_region
    _
  $region13: #{tpu_custom_call.1} parent=0 // pred_fallthru
    _
  %v14 = vld [vmem:[%s0] sm:$0xff]
  %v15 = vld [vmem:[%s0 + $0x8] sm:$0xff]
  %v16 = vld [vmem:[%s0 + $0x10] sm:$0xff]
  %v17 = vld [vmem:[%s0 + $0x18] sm:$0xff]
  %v18 = vld [vmem:[%s0 + $0x28] sm:$0xff]
  %v19 = vld [vmem:[%s0 + $0x30] sm:$0xff]
  %v20 = vld [vmem:[%s0 + $0x38] sm:$0xff]
  %v21 = vld [vmem:[%s0 + $0x40] sm:$0xff]
  %v22 = vld [vmem:[%s0 + $0x50] sm:$0xff]
  %v23 = vld [vmem:[%s0 + $0x58] sm:$0xff]
  %v24 = vld [vmem:[%s0 + $0x60] sm:$0xff]
  %v25 = vld [vmem:[%s0 + $0x68] sm:$0xff]
  %v26 = vld [vmem:[%s0 + $0x78] sm:$0xff]
  %v27 = vld [vmem:[%s0 + $0x80] sm:$0xff]
  %v28 = vld [vmem:[%s0 + $0x88] sm:$0xff]
  %v29 = vld [vmem:[%s0 + $0x90] sm:$0xff]
  %v30 = vld [vmem:[%s0 + $0xa0] sm:$0xff]
  %v31 = vld [vmem:[%s0 + $0xa8] sm:$0xff]
  %v32 = vld [vmem:[%s0 + $0xb0] sm:$0xff]
  %v33 = vld [vmem:[%s0 + $0xb8] sm:$0xff]
  %v34 = vld [vmem:[%s0 + $0xc8] sm:$0xff]
  %v35 = vld [vmem:[%s0 + $0xd0] sm:$0xff]
  %v36 = vld [vmem:[%s0 + $0xd8] sm:$0xff]
  %v37 = vld [vmem:[%s0 + $0xe0] sm:$0xff]
  %v38 = vld [vmem:[%s0 + $0xf0] sm:$0xff]
  %v39 = vld [vmem:[%s0 + $0xf8] sm:$0xff]
  %v40 = vld [vmem:[%s0 + $0x100] sm:$0xff]
  %v41 = vld [vmem:[%s0 + $0x108] sm:$0xff]
  %v42 = vld [vmem:[%s0 + $0x118] sm:$0xff]
  %v43 = vld [vmem:[%s0 + $0x120] sm:$0xff]
  %v44 = vld [vmem:[%s0 + $0x128] sm:$0xff]
  %v45 = vld [vmem:[%s0 + $0x130] sm:$0xff]
  %v46 = vld [vmem:[%s0 + $0x140] sm:$0xff]
  %v47 = vld [vmem:[%s0 + $0x148] sm:$0xff]
  %v48 = vld [vmem:[%s0 + $0x150] sm:$0xff]
  %v49 = vld [vmem:[%s0 + $0x158] sm:$0xff]
  %v50 = vld [vmem:[%s0 + $0x168] sm:$0xff]
  %v51 = vld [vmem:[%s0 + $0x170] sm:$0xff]
  %v52 = vld [vmem:[%s0 + $0x178] sm:$0xff]
  %v53 = vld [vmem:[%s0 + $0x180] sm:$0xff]
  %v54 = vld [vmem:[%s0 + $0x190] sm:$0xff]
  %v55 = vld [vmem:[%s0 + $0x198] sm:$0xff]
  %v56 = vld [vmem:[%s0 + $0x1a0] sm:$0xff]
  %v57 = vld [vmem:[%s0 + $0x1a8] sm:$0xff]
  %v58 = vld [vmem:[%s0 + $0x1b8] sm:$0xff]
  %v59 = vld [vmem:[%s0 + $0x1c0] sm:$0xff]
  %v60 = vld [vmem:[%s0 + $0x1c8] sm:$0xff]
  %v61 = vld [vmem:[%s0 + $0x1d0] sm:$0xff]
  %v62 = vld [vmem:[%s0 + $0x1e0] sm:$0xff]
  %v63 = vld [vmem:[%s0 + $0x1e8] sm:$0xff]
  %v64 = vld [vmem:[%s0 + $0x1f0] sm:$0xff]
  %v65 = vld [vmem:[%s0 + $0x1f8] sm:$0xff]
  %v66 = vld [vmem:[%s0 + $0x208] sm:$0xff]
  %v67 = vld [vmem:[%s0 + $0x210] sm:$0xff]
  %v68 = vld [vmem:[%s0 + $0x218] sm:$0xff]
  %v69 = vld [vmem:[%s0 + $0x220] sm:$0xff]
  %v70 = vld [vmem:[%s0 + $0x230] sm:$0xff]
  %v71 = vld [vmem:[%s0 + $0x238] sm:$0xff]
  %v72 = vld [vmem:[%s0 + $0x240] sm:$0xff]
  %v73 = vld [vmem:[%s0 + $0x248] sm:$0xff]
  %v74 = vld [vmem:[%s0 + $0x258] sm:$0xff]
  %v75 = vld [vmem:[%s0 + $0x260] sm:$0xff]
  %v76 = vld [vmem:[%s0 + $0x268] sm:$0xff]
  %v77 = vld [vmem:[%s0 + $0x270] sm:$0xff]
  %v78 = vld [vmem:[%s1] sm:$0x7]
  %v79 = vld [vmem:[%s0 + $0x1] sm:$0xff]
  %v80 = vld [vmem:[%s0 + $0x9] sm:$0xff]
  %v81 = vld [vmem:[%s0 + $0x11] sm:$0xff]
  %v82 = vld [vmem:[%s0 + $0x19] sm:$0xff]
  %v83 = vld [vmem:[%s0 + $0x29] sm:$0xff]
  %v84 = vld [vmem:[%s0 + $0x31] sm:$0xff]
  %v85 = vld [vmem:[%s0 + $0x39] sm:$0xff]
  %v86 = vld [vmem:[%s0 + $0x41] sm:$0xff]
  %v87 = vld [vmem:[%s0 + $0x51] sm:$0xff]
  %v88 = vld [vmem:[%s0 + $0x59] sm:$0xff]
  %v89 = vld [vmem:[%s0 + $0x61] sm:$0xff]
  %v90 = vld [vmem:[%s0 + $0x69] sm:$0xff]
  %v91 = vld [vmem:[%s0 + $0x79] sm:$0xff]
  %v92 = vld [vmem:[%s0 + $0x81] sm:$0xff]
  %v93 = vld [vmem:[%s0 + $0x89] sm:$0xff]
  %v94 = vld [vmem:[%s0 + $0x91] sm:$0xff]
  %v95 = vld [vmem:[%s0 + $0xa1] sm:$0xff]
  %v96 = vld [vmem:[%s0 + $0xa9] sm:$0xff]
  %v97 = vld [vmem:[%s0 + $0xb1] sm:$0xff]
  %v98 = vld [vmem:[%s0 + $0xb9] sm:$0xff]
  %v99 = vld [vmem:[%s0 + $0xc9] sm:$0xff]
  %v100 = vld [vmem:[%s0 + $0xd1] sm:$0xff]
  %v101 = vld [vmem:[%s0 + $0xd9] sm:$0xff]
  %v102 = vld [vmem:[%s0 + $0xe1] sm:$0xff]
  %v103 = vld [vmem:[%s0 + $0xf1] sm:$0xff]
  %v104 = vld [vmem:[%s0 + $0xf9] sm:$0xff]
  %v105 = vld [vmem:[%s0 + $0x101] sm:$0xff]
  %v106 = vld [vmem:[%s0 + $0x109] sm:$0xff]
  %v107 = vld [vmem:[%s0 + $0x119] sm:$0xff]
  %v108 = vld [vmem:[%s0 + $0x121] sm:$0xff]
  %v109 = vld [vmem:[%s0 + $0x129] sm:$0xff]
  %v110 = vld [vmem:[%s0 + $0x131] sm:$0xff]
  %v111 = vld [vmem:[%s0 + $0x141] sm:$0xff]
  %v112 = vld [vmem:[%s0 + $0x149] sm:$0xff]
  %v113 = vld [vmem:[%s0 + $0x151] sm:$0xff]
  %v114 = vld [vmem:[%s0 + $0x159] sm:$0xff]
  %v115 = vld [vmem:[%s0 + $0x169] sm:$0xff]
  %v116 = vld [vmem:[%s0 + $0x171] sm:$0xff]
  %v117 = vld [vmem:[%s0 + $0x179] sm:$0xff]
  %v118 = vld [vmem:[%s0 + $0x181] sm:$0xff]
  %v119 = vld [vmem:[%s0 + $0x191] sm:$0xff]
  %v120 = vld [vmem:[%s0 + $0x199] sm:$0xff]
  %v121 = vld [vmem:[%s0 + $0x1a1] sm:$0xff]
  %v122 = vld [vmem:[%s0 + $0x1a9] sm:$0xff]
  %v123 = vld [vmem:[%s0 + $0x1b9] sm:$0xff]
  %v124 = vld [vmem:[%s0 + $0x1c1] sm:$0xff]
  %v125 = vld [vmem:[%s0 + $0x1c9] sm:$0xff]
  %v126 = vld [vmem:[%s0 + $0x1d1] sm:$0xff]
  %v127 = vld [vmem:[%s0 + $0x1e1] sm:$0xff]
  %v128 = vld [vmem:[%s0 + $0x1e9] sm:$0xff]
  %v129 = vld [vmem:[%s0 + $0x1f1] sm:$0xff]
  %v130 = vld [vmem:[%s0 + $0x1f9] sm:$0xff]
  %v131 = vld [vmem:[%s0 + $0x209] sm:$0xff]
  %v132 = vld [vmem:[%s0 + $0x211] sm:$0xff]
  %v133 = vld [vmem:[%s0 + $0x219] sm:$0xff]
  %v134 = vld [vmem:[%s0 + $0x221] sm:$0xff]
  %v135 = vld [vmem:[%s0 + $0x231] sm:$0xff]
  %v136 = vld [vmem:[%s0 + $0x239] sm:$0xff]
  %v137 = vld [vmem:[%s0 + $0x241] sm:$0xff]
  %v138 = vld [vmem:[%s0 + $0x249] sm:$0xff]
  %v139 = vld [vmem:[%s0 + $0x259] sm:$0xff]
  %v140 = vld [vmem:[%s0 + $0x261] sm:$0xff]
  %v141 = vld [vmem:[%s0 + $0x269] sm:$0xff]
  %v142 = vld [vmem:[%s0 + $0x271] sm:$0xff]
  %s143 = scalar_lea.vmem %s1, 4
  %v144 = vld [vmem:[%s143] sm:$0x7]
  %vm145 = vcmask 23552
  %v147 = vsel %vm145, %v79, 0
  %v150 = vsel %vm145, %v80, 0
  %v153 = vsel %vm145, %v81, 0
  %v156 = vsel %vm145, %v82, 0
  %v159 = vsel %vm145, %v83, 0
  %v162 = vsel %vm145, %v84, 0
  %v165 = vsel %vm145, %v85, 0
  %v168 = vsel %vm145, %v86, 0
  %v171 = vsel %vm145, %v87, 0
  %v174 = vsel %vm145, %v88, 0
  %v177 = vsel %vm145, %v89, 0
  %v180 = vsel %vm145, %v90, 0
  %v183 = vsel %vm145, %v91, 0
  %v186 = vsel %vm145, %v92, 0
  %v189 = vsel %vm145, %v93, 0
  %v192 = vsel %vm145, %v94, 0
  %v195 = vsel %vm145, %v95, 0
  %v198 = vsel %vm145, %v96, 0
  %v201 = vsel %vm145, %v97, 0
  %v204 = vsel %vm145, %v98, 0
  %v207 = vsel %vm145, %v99, 0
  %v210 = vsel %vm145, %v100, 0
  %v213 = vsel %vm145, %v101, 0
  %v216 = vsel %vm145, %v102, 0
  %v219 = vsel %vm145, %v103, 0
  %v222 = vsel %vm145, %v104, 0
  %v225 = vsel %vm145, %v105, 0
  %v228 = vsel %vm145, %v106, 0
  %v231 = vsel %vm145, %v107, 0
  %v234 = vsel %vm145, %v108, 0
  %v237 = vsel %vm145, %v109, 0
  %v240 = vsel %vm145, %v110, 0
  %v243 = vsel %vm145, %v111, 0
  %v246 = vsel %vm145, %v112, 0
  %v249 = vsel %vm145, %v113, 0
  %v252 = vsel %vm145, %v114, 0
  %v255 = vsel %vm145, %v115, 0
  %v258 = vsel %vm145, %v116, 0
  %v261 = vsel %vm145, %v117, 0
  %v264 = vsel %vm145, %v118, 0
  %v267 = vsel %vm145, %v119, 0
  %v270 = vsel %vm145, %v120, 0
  %v273 = vsel %vm145, %v121, 0
  %v276 = vsel %vm145, %v122, 0
  %v279 = vsel %vm145, %v123, 0
  %v282 = vsel %vm145, %v124, 0
  %v285 = vsel %vm145, %v125, 0
  %v288 = vsel %vm145, %v126, 0
  %v291 = vsel %vm145, %v127, 0
  %v294 = vsel %vm145, %v128, 0
  %v297 = vsel %vm145, %v129, 0
  %v300 = vsel %vm145, %v130, 0
  %v303 = vsel %vm145, %v131, 0
  %v306 = vsel %vm145, %v132, 0
  %v309 = vsel %vm145, %v133, 0
  %v312 = vsel %vm145, %v134, 0
  %v315 = vsel %vm145, %v135, 0
  %v318 = vsel %vm145, %v136, 0
  %v321 = vsel %vm145, %v137, 0
  %v324 = vsel %vm145, %v138, 0
  %v327 = vsel %vm145, %v139, 0
  %v330 = vsel %vm145, %v140, 0
  %v333 = vsel %vm145, %v141, 0
  %v336 = vsel %vm145, %v142, 0
  %vm338 = vcmask 1042432
  %v340 = vsel %vm338, %v144, 0
  %342 = vmatprep.subr.mxu0 0.0
  %343 = vmatpush1.msra.mxu0 %v340
  %344 = vmatprep.subr.mxu0 0.0
  %345 = vmatpush1.msra.mxu0 0.0
  %346 = vmatprep.subr.mxu0 0.0
  %347 = vmatpush1.msra.mxu0 0.0
  %348 = vmatprep.subr.mxu0 0.0
  %349 = vmatpush1.msra.mxu0 0.0
  %350 = vmatprep.subr.mxu0 0.0
  %351 = vmatpush1.msra.mxu0 0.0
  %352 = vmatprep.subr.mxu0 0.0
  %353 = vmatpush1.msra.mxu0 0.0
  %354 = vmatprep.subr.mxu0 0.0
  %355 = vmatpush1.msra.mxu0 0.0
  %356 = vmatprep.subr.mxu0 0.0
  %357 = vmatpush1.msra.mxu0 0.0
  %358 = vmatprep.subr.mxu0 0.0
  %359 = vmatpush1.msra.mxu0 0.0
  %360 = vmatprep.subr.mxu0 0.0
  %361 = vmatpush1.msra.mxu0 0.0
  %362 = vmatprep.subr.mxu0 0.0
  %363 = vmatpush1.msra.mxu0 0.0
  %364 = vmatprep.subr.mxu0 0.0
  %365 = vmatpush1.msra.mxu0 0.0
  %366 = vmatprep.subr.mxu0 0.0
  %367 = vmatpush1.msra.mxu0 0.0
  %368 = vmatprep.subr.mxu0 0.0
  %369 = vmatpush1.msra.mxu0 0.0
  %370 = vmatprep.subr.mxu0 0.0
  %371 = vmatpush1.msra.mxu0 0.0
  %372 = vmatprep.subr.mxu0 0.0
  %373 = vmatpush1.msra.mxu0 0.0
  %374 = vmatprep.subr.mxu0 0.0
  %375 = vmatpush1.msra.mxu0 0.0
  %376 = vmatprep.subr.mxu0 0.0
  %377 = vmatpush1.msra.mxu0 0.0
  %378 = vmatprep.subr.mxu0 0.0
  %379 = vmatpush1.msra.mxu0 0.0
  %380 = vmatprep.subr.mxu0 0.0
  %381 = vmatpush1.msra.mxu0 0.0
  %382 = vmatprep.subr.mxu0 0.0
  %383 = vmatpush1.msra.mxu0 0.0
  %384 = vmatprep.subr.mxu0 0.0
  %385 = vmatpush1.msra.mxu0 0.0
  %386 = vmatprep.subr.mxu0 0.0
  %387 = vmatpush1.msra.mxu0 0.0
  %388 = vmatprep.subr.mxu0 0.0
  %389 = vmatpush1.msra.mxu0 0.0
  %390 = vmatprep.subr.mxu0 0.0
  %391 = vmatpush1.msra.mxu0 0.0
  %392 = vmatprep.subr.mxu0 0.0
  %393 = vmatpush1.msra.mxu0 0.0
  %394 = vmatprep.subr.mxu0 0.0
  %395 = vmatpush1.msra.mxu0 0.0
  %396 = vmatprep.subr.mxu0 0.0
  %397 = vmatpush1.msra.mxu0 0.0
  %398 = vmatprep.subr.mxu0 0.0
  %399 = vmatpush1.msra.mxu0 0.0
  %400 = vmatprep.subr.mxu0 0.0
  %401 = vmatpush1.msra.mxu0 0.0
  %402 = vmatprep.subr.mxu0 0.0
  %403 = vmatpush1.msra.mxu0 0.0
  %404 = vmatprep.subr.mxu0 0.0
  %405 = vmatpush1.msra.mxu0 0.0
  %406 = vmatprep.mubr.f32.mxu0 0.0
  %407 = vmatmul.mubr.f32.gmra.mrb[0].mxu0 %v147
  %v408 = vpop.f32.mrb[0].mxu0
  %v409 = vadd.f32 0.0, %v408
  %v410 = vpop.f32.mrb[0].mxu0
  %411 = vmatprep.mubr.f32.mxu0 0.0
  %412 = vmatmul.mubr.f32.gmra.mrb[0].mxu0 %v150
  %v413 = vpop.f32.mrb[0].mxu0
  %v414 = vadd.f32 0.0, %v413
  %v415 = vpop.f32.mrb[0].mxu0
  %416 = vmatprep.mubr.f32.mxu0 0.0
  %417 = vmatmul.mubr.f32.gmra.mrb[0].mxu0 %v153
  %v418 = vpop.f32.mrb[0].mxu0
  %v419 = vadd.f32 0.0, %v418
  %v420 = vpop.f32.mrb[0].mxu0
  %421 = vmatprep.mubr.f32.mxu0 0.0
  %422 = vmatmul.mubr.f32.gmra.mrb[0].mxu0 %v156
  %v423 = vpop.f32.mrb[0].mxu0
  %v424 = vadd.f32 0.0, %v423
  %v425 = vpop.f32.mrb[0].mxu0
  %426 = vmatprep.mubr.f32.mxu0 0.0
  %427 = vmatmul.mubr.f32.gmra.mrb[0].mxu0 %v159
  %v428 = vpop.f32.mrb[0].mxu0
  %v429 = vadd.f32 0.0, %v428
  %v430 = vpop.f32.mrb[0].mxu0
  %431 = vmatprep.mubr.f32.mxu0 0.0
  %432 = vmatmul.mubr.f32.gmra.mrb[0].mxu0 %v162
  %v433 = vpop.f32.mrb[0].mxu0
  %v434 = vadd.f32 0.0, %v433
  %v435 = vpop.f32.mrb[0].mxu0
  %436 = vmatprep.mubr.f32.mxu0 0.0
  %437 = vmatmul.mubr.f32.gmra.mrb[0].mxu0 %v165
  %v438 = vpop.f32.mrb[0].mxu0
  %v439 = vadd.f32 0.0, %v438
  %v440 = vpop.f32.mrb[0].mxu0
  %441 = vmatprep.mubr.f32.mxu0 0.0
  %442 = vmatmul.mubr.f32.gmra.mrb[0].mxu0 %v168
  %v443 = vpop.f32.mrb[0].mxu0
  %v444 = vadd.f32 0.0, %v443
  %v445 = vpop.f32.mrb[0].mxu0
  %446 = vmatprep.mubr.f32.mxu0 0.0
  %447 = vmatmul.mubr.f32.gmra.mrb[0].mxu0 %v171
  %v448 = vpop.f32.mrb[0].mxu0
  %v449 = vadd.f32 0.0, %v448
  %v450 = vpop.f32.mrb[0].mxu0
  %451 = vmatprep.mubr.f32.mxu0 0.0
  %452 = vmatmul.mubr.f32.gmra.mrb[0].mxu0 %v174
  %v453 = vpop.f32.mrb[0].mxu0
  %v454 = vadd.f32 0.0, %v453
  %v455 = vpop.f32.mrb[0].mxu0
  %456 = vmatprep.mubr.f32.mxu0 0.0
  %457 = vmatmul.mubr.f32.gmra.mrb[0].mxu0 %v177
  %v458 = vpop.f32.mrb[0].mxu0
  %v459 = vadd.f32 0.0, %v458
  %v460 = vpop.f32.mrb[0].mxu0
  %461 = vmatprep.mubr.f32.mxu0 0.0
  %462 = vmatmul.mubr.f32.gmra.mrb[0].mxu0 %v180
  %v463 = vpop.f32.mrb[0].mxu0
  %v464 = vadd.f32 0.0, %v463
  %v465 = vpop.f32.mrb[0].mxu0
  %466 = vmatprep.mubr.f32.mxu0 0.0
  %467 = vmatmul.mubr.f32.gmra.mrb[0].mxu0 %v183
  %v468 = vpop.f32.mrb[0].mxu0
  %v469 = vadd.f32 0.0, %v468
  %v470 = vpop.f32.mrb[0].mxu0
  %471 = vmatprep.mubr.f32.mxu0 0.0
  %472 = vmatmul.mubr.f32.gmra.mrb[0].mxu0 %v186
  %v473 = vpop.f32.mrb[0].mxu0
  %v474 = vadd.f32 0.0, %v473
  %v475 = vpop.f32.mrb[0].mxu0
  %476 = vmatprep.mubr.f32.mxu0 0.0
  %477 = vmatmul.mubr.f32.gmra.mrb[0].mxu0 %v189
  %v478 = vpop.f32.mrb[0].mxu0
  %v479 = vadd.f32 0.0, %v478
  %v480 = vpop.f32.mrb[0].mxu0
  %481 = vmatprep.mubr.f32.mxu0 0.0
  %482 = vmatmul.mubr.f32.gmra.mrb[0].mxu0 %v192
  %v483 = vpop.f32.mrb[0].mxu0
  %v484 = vadd.f32 0.0, %v483
  %v485 = vpop.f32.mrb[0].mxu0
  %486 = vmatprep.mubr.f32.mxu0 0.0
  %487 = vmatmul.mubr.f32.gmra.mrb[0].mxu0 %v195
  %v488 = vpop.f32.mrb[0].mxu0
  %v489 = vadd.f32 0.0, %v488
  %v490 = vpop.f32.mrb[0].mxu0
  %491 = vmatprep.mubr.f32.mxu0 0.0
  %492 = vmatmul.mubr.f32.gmra.mrb[0].mxu0 %v198
  %v493 = vpop.f32.mrb[0].mxu0
  %v494 = vadd.f32 0.0, %v493
  %v495 = vpop.f32.mrb[0].mxu0
  %496 = vmatprep.mubr.f32.mxu0 0.0
  %497 = vmatmul.mubr.f32.gmra.mrb[0].mxu0 %v201
  %v498 = vpop.f32.mrb[0].mxu0
  %v499 = vadd.f32 0.0, %v498
  %v500 = vpop.f32.mrb[0].mxu0
  %501 = vmatprep.mubr.f32.mxu0 0.0
  %502 = vmatmul.mubr.f32.gmra.mrb[0].mxu0 %v204
  %v503 = vpop.f32.mrb[0].mxu0
  %v504 = vadd.f32 0.0, %v503
  %v505 = vpop.f32.mrb[0].mxu0
  %506 = vmatprep.mubr.f32.mxu0 0.0
  %507 = vmatmul.mubr.f32.gmra.mrb[0].mxu0 %v207
  %v508 = vpop.f32.mrb[0].mxu0
  %v509 = vadd.f32 0.0, %v508
  %v510 = vpop.f32.mrb[0].mxu0
  %511 = vmatprep.mubr.f32.mxu0 0.0
  %512 = vmatmul.mubr.f32.gmra.mrb[0].mxu0 %v210
  %v513 = vpop.f32.mrb[0].mxu0
  %v514 = vadd.f32 0.0, %v513
  %v515 = vpop.f32.mrb[0].mxu0
  %516 = vmatprep.mubr.f32.mxu0 0.0
  %517 = vmatmul.mubr.f32.gmra.mrb[0].mxu0 %v213
  %v518 = vpop.f32.mrb[0].mxu0
  %v519 = vadd.f32 0.0, %v518
  %v520 = vpop.f32.mrb[0].mxu0
  %521 = vmatprep.mubr.f32.mxu0 0.0
  %522 = vmatmul.mubr.f32.gmra.mrb[0].mxu0 %v216
  %v523 = vpop.f32.mrb[0].mxu0
  %v524 = vadd.f32 0.0, %v523
  %v525 = vpop.f32.mrb[0].mxu0
  %526 = vmatprep.mubr.f32.mxu0 0.0
  %527 = vmatmul.mubr.f32.gmra.mrb[0].mxu0 %v219
  %v528 = vpop.f32.mrb[0].mxu0
  %v529 = vadd.f32 0.0, %v528
  %v530 = vpop.f32.mrb[0].mxu0
  %531 = vmatprep.mubr.f32.mxu0 0.0
  %532 = vmatmul.mubr.f32.gmra.mrb[0].mxu0 %v222
  %v533 = vpop.f32.mrb[0].mxu0
  %v534 = vadd.f32 0.0, %v533
  %v535 = vpop.f32.mrb[0].mxu0
  %536 = vmatprep.mubr.f32.mxu0 0.0
  %537 = vmatmul.mubr.f32.gmra.mrb[0].mxu0 %v225
  %v538 = vpop.f32.mrb[0].mxu0
  %v539 = vadd.f32 0.0, %v538
  %v540 = vpop.f32.mrb[0].mxu0
  %541 = vmatprep.mubr.f32.mxu0 0.0
  %542 = vmatmul.mubr.f32.gmra.mrb[0].mxu0 %v228
  %v543 = vpop.f32.mrb[0].mxu0
  %v544 = vadd.f32 0.0, %v543
  %v545 = vpop.f32.mrb[0].mxu0
  %546 = vmatprep.mubr.f32.mxu0 0.0
  %547 = vmatmul.mubr.f32.gmra.mrb[0].mxu0 %v231
  %v548 = vpop.f32.mrb[0].mxu0
  %v549 = vadd.f32 0.0, %v548
  %v550 = vpop.f32.mrb[0].mxu0
  %551 = vmatprep.mubr.f32.mxu0 0.0
  %552 = vmatmul.mubr.f32.gmra.mrb[0].mxu0 %v234
  %v553 = vpop.f32.mrb[0].mxu0
  %v554 = vadd.f32 0.0, %v553
  %v555 = vpop.f32.mrb[0].mxu0
  %556 = vmatprep.mubr.f32.mxu0 0.0
  %557 = vmatmul.mubr.f32.gmra.mrb[0].mxu0 %v237
  %v558 = vpop.f32.mrb[0].mxu0
  %v559 = vadd.f32 0.0, %v558
  %v560 = vpop.f32.mrb[0].mxu0
  %561 = vmatprep.mubr.f32.mxu0 0.0
  %562 = vmatmul.mubr.f32.gmra.mrb[0].mxu0 %v240
  %v563 = vpop.f32.mrb[0].mxu0
  %v564 = vadd.f32 0.0, %v563
  %v565 = vpop.f32.mrb[0].mxu0
  %566 = vmatprep.mubr.f32.mxu0 0.0
  %567 = vmatmul.mubr.f32.gmra.mrb[0].mxu0 %v243
  %v568 = vpop.f32.mrb[0].mxu0
  %v569 = vadd.f32 0.0, %v568
  %v570 = vpop.f32.mrb[0].mxu0
  %571 = vmatprep.mubr.f32.mxu0 0.0
  %572 = vmatmul.mubr.f32.gmra.mrb[0].mxu0 %v246
  %v573 = vpop.f32.mrb[0].mxu0
  %v574 = vadd.f32 0.0, %v573
  %v575 = vpop.f32.mrb[0].mxu0
  %576 = vmatprep.mubr.f32.mxu0 0.0
  %577 = vmatmul.mubr.f32.gmra.mrb[0].mxu0 %v249
  %v578 = vpop.f32.mrb[0].mxu0
  %v579 = vadd.f32 0.0, %v578
  %v580 = vpop.f32.mrb[0].mxu0
  %581 = vmatprep.mubr.f32.mxu0 0.0
  %582 = vmatmul.mubr.f32.gmra.mrb[0].mxu0 %v252
  %v583 = vpop.f32.mrb[0].mxu0
  %v584 = vadd.f32 0.0, %v583
  %v585 = vpop.f32.mrb[0].mxu0
  %586 = vmatprep.mubr.f32.mxu0 0.0
  %587 = vmatmul.mubr.f32.gmra.mrb[0].mxu0 %v255
  %v588 = vpop.f32.mrb[0].mxu0
  %v589 = vadd.f32 0.0, %v588
  %v590 = vpop.f32.mrb[0].mxu0
  %591 = vmatprep.mubr.f32.mxu0 0.0
  %592 = vmatmul.mubr.f32.gmra.mrb[0].mxu0 %v258
  %v593 = vpop.f32.mrb[0].mxu0
  %v594 = vadd.f32 0.0, %v593
  %v595 = vpop.f32.mrb[0].mxu0
  %596 = vmatprep.mubr.f32.mxu0 0.0
  %597 = vmatmul.mubr.f32.gmra.mrb[0].mxu0 %v261
  %v598 = vpop.f32.mrb[0].mxu0
  %v599 = vadd.f32 0.0, %v598
  %v600 = vpop.f32.mrb[0].mxu0
  %601 = vmatprep.mubr.f32.mxu0 0.0
  %602 = vmatmul.mubr.f32.gmra.mrb[0].mxu0 %v264
  %v603 = vpop.f32.mrb[0].mxu0
  %v604 = vadd.f32 0.0, %v603
  %v605 = vpop.f32.mrb[0].mxu0
  %606 = vmatprep.mubr.f32.mxu0 0.0
  %607 = vmatmul.mubr.f32.gmra.mrb[0].mxu0 %v267
  %v608 = vpop.f32.mrb[0].mxu0
  %v609 = vadd.f32 0.0, %v608
  %v610 = vpop.f32.mrb[0].mxu0
  %611 = vmatprep.mubr.f32.mxu0 0.0
  %612 = vmatmul.mubr.f32.gmra.mrb[0].mxu0 %v270
  %v613 = vpop.f32.mrb[0].mxu0
  %v614 = vadd.f32 0.0, %v613
  %v615 = vpop.f32.mrb[0].mxu0
  %616 = vmatprep.mubr.f32.mxu0 0.0
  %617 = vmatmul.mubr.f32.gmra.mrb[0].mxu0 %v273
  %v618 = vpop.f32.mrb[0].mxu0
  %v619 = vadd.f32 0.0, %v618
  %v620 = vpop.f32.mrb[0].mxu0
  %621 = vmatprep.mubr.f32.mxu0 0.0
  %622 = vmatmul.mubr.f32.gmra.mrb[0].mxu0 %v276
  %v623 = vpop.f32.mrb[0].mxu0
  %v624 = vadd.f32 0.0, %v623
  %v625 = vpop.f32.mrb[0].mxu0
  %626 = vmatprep.mubr.f32.mxu0 0.0
  %627 = vmatmul.mubr.f32.gmra.mrb[0].mxu0 %v279
  %v628 = vpop.f32.mrb[0].mxu0
  %v629 = vadd.f32 0.0, %v628
  %v630 = vpop.f32.mrb[0].mxu0
  %631 = vmatprep.mubr.f32.mxu0 0.0
  %632 = vmatmul.mubr.f32.gmra.mrb[0].mxu0 %v282
  %v633 = vpop.f32.mrb[0].mxu0
  %v634 = vadd.f32 0.0, %v633
  %v635 = vpop.f32.mrb[0].mxu0
  %636 = vmatprep.mubr.f32.mxu0 0.0
  %637 = vmatmul.mubr.f32.gmra.mrb[0].mxu0 %v285
  %v638 = vpop.f32.mrb[0].mxu0
  %v639 = vadd.f32 0.0, %v638
  %v640 = vpop.f32.mrb[0].mxu0
  %641 = vmatprep.mubr.f32.mxu0 0.0
  %642 = vmatmul.mubr.f32.gmra.mrb[0].mxu0 %v288
  %v643 = vpop.f32.mrb[0].mxu0
  %v644 = vadd.f32 0.0, %v643
  %v645 = vpop.f32.mrb[0].mxu0
  %646 = vmatprep.mubr.f32.mxu0 0.0
  %647 = vmatmul.mubr.f32.gmra.mrb[0].mxu0 %v291
  %v648 = vpop.f32.mrb[0].mxu0
  %v649 = vadd.f32 0.0, %v648
  %v650 = vpop.f32.mrb[0].mxu0
  %651 = vmatprep.mubr.f32.mxu0 0.0
  %652 = vmatmul.mubr.f32.gmra.mrb[0].mxu0 %v294
  %v653 = vpop.f32.mrb[0].mxu0
  %v654 = vadd.f32 0.0, %v653
  %v655 = vpop.f32.mrb[0].mxu0
  %656 = vmatprep.mubr.f32.mxu0 0.0
  %657 = vmatmul.mubr.f32.gmra.mrb[0].mxu0 %v297
  %v658 = vpop.f32.mrb[0].mxu0
  %v659 = vadd.f32 0.0, %v658
  %v660 = vpop.f32.mrb[0].mxu0
  %661 = vmatprep.mubr.f32.mxu0 0.0
  %662 = vmatmul.mubr.f32.gmra.mrb[0].mxu0 %v300
  %v663 = vpop.f32.mrb[0].mxu0
  %v664 = vadd.f32 0.0, %v663
  %v665 = vpop.f32.mrb[0].mxu0
  %666 = vmatprep.mubr.f32.mxu0 0.0
  %667 = vmatmul.mubr.f32.gmra.mrb[0].mxu0 %v303
  %v668 = vpop.f32.mrb[0].mxu0
  %v669 = vadd.f32 0.0, %v668
  %v670 = vpop.f32.mrb[0].mxu0
  %671 = vmatprep.mubr.f32.mxu0 0.0
  %672 = vmatmul.mubr.f32.gmra.mrb[0].mxu0 %v306
  %v673 = vpop.f32.mrb[0].mxu0
  %v674 = vadd.f32 0.0, %v673
  %v675 = vpop.f32.mrb[0].mxu0
  %676 = vmatprep.mubr.f32.mxu0 0.0
  %677 = vmatmul.mubr.f32.gmra.mrb[0].mxu0 %v309
  %v678 = vpop.f32.mrb[0].mxu0
  %v679 = vadd.f32 0.0, %v678
  %v680 = vpop.f32.mrb[0].mxu0
  %681 = vmatprep.mubr.f32.mxu0 0.0
  %682 = vmatmul.mubr.f32.gmra.mrb[0].mxu0 %v312
  %v683 = vpop.f32.mrb[0].mxu0
  %v684 = vadd.f32 0.0, %v683
  %v685 = vpop.f32.mrb[0].mxu0
  %686 = vmatprep.mubr.f32.mxu0 0.0
  %687 = vmatmul.mubr.f32.gmra.mrb[0].mxu0 %v315
  %v688 = vpop.f32.mrb[0].mxu0
  %v689 = vadd.f32 0.0, %v688
  %v690 = vpop.f32.mrb[0].mxu0
  %691 = vmatprep.mubr.f32.mxu0 0.0
  %692 = vmatmul.mubr.f32.gmra.mrb[0].mxu0 %v318
  %v693 = vpop.f32.mrb[0].mxu0
  %v694 = vadd.f32 0.0, %v693
  %v695 = vpop.f32.mrb[0].mxu0
  %696 = vmatprep.mubr.f32.mxu0 0.0
  %697 = vmatmul.mubr.f32.gmra.mrb[0].mxu0 %v321
  %v698 = vpop.f32.mrb[0].mxu0
  %v699 = vadd.f32 0.0, %v698
  %v700 = vpop.f32.mrb[0].mxu0
  %701 = vmatprep.mubr.f32.mxu0 0.0
  %702 = vmatmul.mubr.f32.gmra.mrb[0].mxu0 %v324
  %v703 = vpop.f32.mrb[0].mxu0
  %v704 = vadd.f32 0.0, %v703
  %v705 = vpop.f32.mrb[0].mxu0
  %706 = vmatprep.mubr.f32.mxu0 0.0
  %707 = vmatmul.mubr.f32.gmra.mrb[0].mxu0 %v327
  %v708 = vpop.f32.mrb[0].mxu0
  %v709 = vadd.f32 0.0, %v708
  %v710 = vpop.f32.mrb[0].mxu0
  %711 = vmatprep.mubr.f32.mxu0 0.0
  %712 = vmatmul.mubr.f32.gmra.mrb[0].mxu0 %v330
  %v713 = vpop.f32.mrb[0].mxu0
  %v714 = vadd.f32 0.0, %v713
  %v715 = vpop.f32.mrb[0].mxu0
  %716 = vmatprep.mubr.f32.mxu0 0.0
  %717 = vmatmul.mubr.f32.gmra.mrb[0].mxu0 %v333
  %v718 = vpop.f32.mrb[0].mxu0
  %v719 = vadd.f32 0.0, %v718
  %v720 = vpop.f32.mrb[0].mxu0
  %721 = vmatprep.mubr.f32.mxu0 0.0
  %722 = vmatmul.mubr.f32.gmra.mrb[0].mxu0 %v336
  %v723 = vpop.f32.mrb[0].mxu0
  %v724 = vadd.f32 0.0, %v723
  %v725 = vpop.f32.mrb[0].mxu0
  %726 = vdwg.mxu0
  %v728 = vsel %vm145, %v14, 0
  %v731 = vsel %vm145, %v15, 0
  %v734 = vsel %vm145, %v16, 0
  %v737 = vsel %vm145, %v17, 0
  %v740 = vsel %vm145, %v18, 0
  %v743 = vsel %vm145, %v19, 0
  %v746 = vsel %vm145, %v20, 0
  %v749 = vsel %vm145, %v21, 0
  %v752 = vsel %vm145, %v22, 0
  %v755 = vsel %vm145, %v23, 0
  %v758 = vsel %vm145, %v24, 0
  %v761 = vsel %vm145, %v25, 0
  %v764 = vsel %vm145, %v26, 0
  %v767 = vsel %vm145, %v27, 0
  %v770 = vsel %vm145, %v28, 0
  %v773 = vsel %vm145, %v29, 0
  %v776 = vsel %vm145, %v30, 0
  %v779 = vsel %vm145, %v31, 0
  %v782 = vsel %vm145, %v32, 0
  %v785 = vsel %vm145, %v33, 0
  %v788 = vsel %vm145, %v34, 0
  %v791 = vsel %vm145, %v35, 0
  %v794 = vsel %vm145, %v36, 0
  %v797 = vsel %vm145, %v37, 0
  %v800 = vsel %vm145, %v38, 0
  %v803 = vsel %vm145, %v39, 0
  %v806 = vsel %vm145, %v40, 0
  %v809 = vsel %vm145, %v41, 0
  %v812 = vsel %vm145, %v42, 0
  %v815 = vsel %vm145, %v43, 0
  %v818 = vsel %vm145, %v44, 0
  %v821 = vsel %vm145, %v45, 0
  %v824 = vsel %vm145, %v46, 0
  %v827 = vsel %vm145, %v47, 0
  %v830 = vsel %vm145, %v48, 0
  %v833 = vsel %vm145, %v49, 0
  %v836 = vsel %vm145, %v50, 0
  %v839 = vsel %vm145, %v51, 0
  %v842 = vsel %vm145, %v52, 0
  %v845 = vsel %vm145, %v53, 0
  %v848 = vsel %vm145, %v54, 0
  %v851 = vsel %vm145, %v55, 0
  %v854 = vsel %vm145, %v56, 0
  %v857 = vsel %vm145, %v57, 0
  %v860 = vsel %vm145, %v58, 0
  %v863 = vsel %vm145, %v59, 0
  %v866 = vsel %vm145, %v60, 0
  %v869 = vsel %vm145, %v61, 0
  %v872 = vsel %vm145, %v62, 0
  %v875 = vsel %vm145, %v63, 0
  %v878 = vsel %vm145, %v64, 0
  %v881 = vsel %vm145, %v65, 0
  %v884 = vsel %vm145, %v66, 0
  %v887 = vsel %vm145, %v67, 0
  %v890 = vsel %vm145, %v68, 0
  %v893 = vsel %vm145, %v69, 0
  %v896 = vsel %vm145, %v70, 0
  %v899 = vsel %vm145, %v71, 0
  %v902 = vsel %vm145, %v72, 0
  %v905 = vsel %vm145, %v73, 0
  %v908 = vsel %vm145, %v74, 0
  %v911 = vsel %vm145, %v75, 0
  %v914 = vsel %vm145, %v76, 0
  %v917 = vsel %vm145, %v77, 0
  %v920 = vsel %vm338, %v78, 0
  %922 = vmatprep.subr.mxu0 0.0
  %923 = vmatpush1.msra.mxu0 %v920
  %924 = vmatprep.subr.mxu0 0.0
  %925 = vmatpush1.msra.mxu0 0.0
  %926 = vmatprep.subr.mxu0 0.0
  %927 = vmatpush1.msra.mxu0 0.0
  %928 = vmatprep.subr.mxu0 0.0
  %929 = vmatpush1.msra.mxu0 0.0
  %930 = vmatprep.subr.mxu0 0.0
  %931 = vmatpush1.msra.mxu0 0.0
  %932 = vmatprep.subr.mxu0 0.0
  %933 = vmatpush1.msra.mxu0 0.0
  %934 = vmatprep.subr.mxu0 0.0
  %935 = vmatpush1.msra.mxu0 0.0
  %936 = vmatprep.subr.mxu0 0.0
  %937 = vmatpush1.msra.mxu0 0.0
  %938 = vmatprep.subr.mxu0 0.0
  %939 = vmatpush1.msra.mxu0 0.0
  %940 = vmatprep.subr.mxu0 0.0
  %941 = vmatpush1.msra.mxu0 0.0
  %942 = vmatprep.subr.mxu0 0.0
  %943 = vmatpush1.msra.mxu0 0.0
  %944 = vmatprep.subr.mxu0 0.0
  %945 = vmatpush1.msra.mxu0 0.0
  %946 = vmatprep.subr.mxu0 0.0
  %947 = vmatpush1.msra.mxu0 0.0
  %948 = vmatprep.subr.mxu0 0.0
  %949 = vmatpush1.msra.mxu0 0.0
  %950 = vmatprep.subr.mxu0 0.0
  %951 = vmatpush1.msra.mxu0 0.0
  %952 = vmatprep.subr.mxu0 0.0
  %953 = vmatpush1.msra.mxu0 0.0
  %954 = vmatprep.subr.mxu0 0.0
  %955 = vmatpush1.msra.mxu0 0.0
  %956 = vmatprep.subr.mxu0 0.0
  %957 = vmatpush1.msra.mxu0 0.0
  %958 = vmatprep.subr.mxu0 0.0
  %959 = vmatpush1.msra.mxu0 0.0
  %960 = vmatprep.subr.mxu0 0.0
  %961 = vmatpush1.msra.mxu0 0.0
  %962 = vmatprep.subr.mxu0 0.0
  %963 = vmatpush1.msra.mxu0 0.0
  %964 = vmatprep.subr.mxu0 0.0
  %965 = vmatpush1.msra.mxu0 0.0
  %966 = vmatprep.subr.mxu0 0.0
  %967 = vmatpush1.msra.mxu0 0.0
  %968 = vmatprep.subr.mxu0 0.0
  %969 = vmatpush1.msra.mxu0 0.0
  %970 = vmatprep.subr.mxu0 0.0
  %971 = vmatpush1.msra.mxu0 0.0
  %972 = vmatprep.subr.mxu0 0.0
  %973 = vmatpush1.msra.mxu0 0.0
  %974 = vmatprep.subr.mxu0 0.0
  %975 = vmatpush1.msra.mxu0 0.0
  %976 = vmatprep.subr.mxu0 0.0
  %977 = vmatpush1.msra.mxu0 0.0
  %978 = vmatprep.subr.mxu0 0.0
  %979 = vmatpush1.msra.mxu0 0.0
  %980 = vmatprep.subr.mxu0 0.0
  %981 = vmatpush1.msra.mxu0 0.0
  %982 = vmatprep.subr.mxu0 0.0
  %983 = vmatpush1.msra.mxu0 0.0
  %984 = vmatprep.subr.mxu0 0.0
  %985 = vmatpush1.msra.mxu0 0.0
  %986 = vmatprep.mubr.f32.mxu0 0.0
  %987 = vmatmul.mubr.f32.gmra.mrb[0].mxu0 %v728
  %v988 = vpop.f32.mrb[0].mxu0
  %v989 = vadd.f32 %v409, %v988
  %v990 = vpop.f32.mrb[0].mxu0
  %991 = vmatprep.mubr.f32.mxu0 0.0
  %992 = vmatmul.mubr.f32.gmra.mrb[0].mxu0 %v731
  %v993 = vpop.f32.mrb[0].mxu0
  %v994 = vadd.f32 %v414, %v993
  %v995 = vpop.f32.mrb[0].mxu0
  %996 = vmatprep.mubr.f32.mxu0 0.0
  %997 = vmatmul.mubr.f32.gmra.mrb[0].mxu0 %v734
  %v998 = vpop.f32.mrb[0].mxu0
  %v999 = vadd.f32 %v419, %v998
  %v1000 = vpop.f32.mrb[0].mxu0
  %1001 = vmatprep.mubr.f32.mxu0 0.0
  %1002 = vmatmul.mubr.f32.gmra.mrb[0].mxu0 %v737
  %v1003 = vpop.f32.mrb[0].mxu0
  %v1004 = vadd.f32 %v424, %v1003
  %v1005 = vpop.f32.mrb[0].mxu0
  %1006 = vmatprep.mubr.f32.mxu0 0.0
  %1007 = vmatmul.mubr.f32.gmra.mrb[0].mxu0 %v740
  %v1008 = vpop.f32.mrb[0].mxu0
  %v1009 = vadd.f32 %v429, %v1008
  %v1010 = vpop.f32.mrb[0].mxu0
  %1011 = vmatprep.mubr.f32.mxu0 0.0
  %1012 = vmatmul.mubr.f32.gmra.mrb[0].mxu0 %v743
  %v1013 = vpop.f32.mrb[0].mxu0
  %v1014 = vadd.f32 %v434, %v1013
  %v1015 = vpop.f32.mrb[0].mxu0
  %1016 = vmatprep.mubr.f32.mxu0 0.0
  %1017 = vmatmul.mubr.f32.gmra.mrb[0].mxu0 %v746
  %v1018 = vpop.f32.mrb[0].mxu0
  %v1019 = vadd.f32 %v439, %v1018
  %v1020 = vpop.f32.mrb[0].mxu0
  %1021 = vmatprep.mubr.f32.mxu0 0.0
  %1022 = vmatmul.mubr.f32.gmra.mrb[0].mxu0 %v749
  %v1023 = vpop.f32.mrb[0].mxu0
  %v1024 = vadd.f32 %v444, %v1023
  %v1025 = vpop.f32.mrb[0].mxu0
  %1026 = vmatprep.mubr.f32.mxu0 0.0
  %1027 = vmatmul.mubr.f32.gmra.mrb[0].mxu0 %v752
  %v1028 = vpop.f32.mrb[0].mxu0
  %v1029 = vadd.f32 %v449, %v1028
  %v1030 = vpop.f32.mrb[0].mxu0
  %1031 = vmatprep.mubr.f32.mxu0 0.0
  %1032 = vmatmul.mubr.f32.gmra.mrb[0].mxu0 %v755
  %v1033 = vpop.f32.mrb[0].mxu0
  %v1034 = vadd.f32 %v454, %v1033
  %v1035 = vpop.f32.mrb[0].mxu0
  %1036 = vmatprep.mubr.f32.mxu0 0.0
  %1037 = vmatmul.mubr.f32.gmra.mrb[0].mxu0 %v758
  %v1038 = vpop.f32.mrb[0].mxu0
  %v1039 = vadd.f32 %v459, %v1038
  %v1040 = vpop.f32.mrb[0].mxu0
  %1041 = vmatprep.mubr.f32.mxu0 0.0
  %1042 = vmatmul.mubr.f32.gmra.mrb[0].mxu0 %v761
  %v1043 = vpop.f32.mrb[0].mxu0
  %v1044 = vadd.f32 %v464, %v1043
  %v1045 = vpop.f32.mrb[0].mxu0
  %1046 = vmatprep.mubr.f32.mxu0 0.0
  %1047 = vmatmul.mubr.f32.gmra.mrb[0].mxu0 %v764
  %v1048 = vpop.f32.mrb[0].mxu0
  %v1049 = vadd.f32 %v469, %v1048
  %v1050 = vpop.f32.mrb[0].mxu0
  %1051 = vmatprep.mubr.f32.mxu0 0.0
  %1052 = vmatmul.mubr.f32.gmra.mrb[0].mxu0 %v767
  %v1053 = vpop.f32.mrb[0].mxu0
  %v1054 = vadd.f32 %v474, %v1053
  %v1055 = vpop.f32.mrb[0].mxu0
  %1056 = vmatprep.mubr.f32.mxu0 0.0
  %1057 = vmatmul.mubr.f32.gmra.mrb[0].mxu0 %v770
  %v1058 = vpop.f32.mrb[0].mxu0
  %v1059 = vadd.f32 %v479, %v1058
  %v1060 = vpop.f32.mrb[0].mxu0
  %1061 = vmatprep.mubr.f32.mxu0 0.0
  %1062 = vmatmul.mubr.f32.gmra.mrb[0].mxu0 %v773
  %v1063 = vpop.f32.mrb[0].mxu0
  %v1064 = vadd.f32 %v484, %v1063
  %v1065 = vpop.f32.mrb[0].mxu0
  %1066 = vmatprep.mubr.f32.mxu0 0.0
  %1067 = vmatmul.mubr.f32.gmra.mrb[0].mxu0 %v776
  %v1068 = vpop.f32.mrb[0].mxu0
  %v1069 = vadd.f32 %v489, %v1068
  %v1070 = vpop.f32.mrb[0].mxu0
  %1071 = vmatprep.mubr.f32.mxu0 0.0
  %1072 = vmatmul.mubr.f32.gmra.mrb[0].mxu0 %v779
  %v1073 = vpop.f32.mrb[0].mxu0
  %v1074 = vadd.f32 %v494, %v1073
  %v1075 = vpop.f32.mrb[0].mxu0
  %1076 = vmatprep.mubr.f32.mxu0 0.0
  %1077 = vmatmul.mubr.f32.gmra.mrb[0].mxu0 %v782
  %v1078 = vpop.f32.mrb[0].mxu0
  %v1079 = vadd.f32 %v499, %v1078
  %v1080 = vpop.f32.mrb[0].mxu0
  %1081 = vmatprep.mubr.f32.mxu0 0.0
  %1082 = vmatmul.mubr.f32.gmra.mrb[0].mxu0 %v785
  %v1083 = vpop.f32.mrb[0].mxu0
  %v1084 = vadd.f32 %v504, %v1083
  %v1085 = vpop.f32.mrb[0].mxu0
  %1086 = vmatprep.mubr.f32.mxu0 0.0
  %1087 = vmatmul.mubr.f32.gmra.mrb[0].mxu0 %v788
  %v1088 = vpop.f32.mrb[0].mxu0
  %v1089 = vadd.f32 %v509, %v1088
  %v1090 = vpop.f32.mrb[0].mxu0
  %1091 = vmatprep.mubr.f32.mxu0 0.0
  %1092 = vmatmul.mubr.f32.gmra.mrb[0].mxu0 %v791
  %v1093 = vpop.f32.mrb[0].mxu0
  %v1094 = vadd.f32 %v514, %v1093
  %v1095 = vpop.f32.mrb[0].mxu0
  %1096 = vmatprep.mubr.f32.mxu0 0.0
  %1097 = vmatmul.mubr.f32.gmra.mrb[0].mxu0 %v794
  %v1098 = vpop.f32.mrb[0].mxu0
  %v1099 = vadd.f32 %v519, %v1098
  %v1100 = vpop.f32.mrb[0].mxu0
  %1101 = vmatprep.mubr.f32.mxu0 0.0
  %1102 = vmatmul.mubr.f32.gmra.mrb[0].mxu0 %v797
  %v1103 = vpop.f32.mrb[0].mxu0
  %v1104 = vadd.f32 %v524, %v1103
  %v1105 = vpop.f32.mrb[0].mxu0
  %1106 = vmatprep.mubr.f32.mxu0 0.0
  %1107 = vmatmul.mubr.f32.gmra.mrb[0].mxu0 %v800
  %v1108 = vpop.f32.mrb[0].mxu0
  %v1109 = vadd.f32 %v529, %v1108
  %v1110 = vpop.f32.mrb[0].mxu0
  %1111 = vmatprep.mubr.f32.mxu0 0.0
  %1112 = vmatmul.mubr.f32.gmra.mrb[0].mxu0 %v803
  %v1113 = vpop.f32.mrb[0].mxu0
  %v1114 = vadd.f32 %v534, %v1113
  %v1115 = vpop.f32.mrb[0].mxu0
  %1116 = vmatprep.mubr.f32.mxu0 0.0
  %1117 = vmatmul.mubr.f32.gmra.mrb[0].mxu0 %v806
  %v1118 = vpop.f32.mrb[0].mxu0
  %v1119 = vadd.f32 %v539, %v1118
  %v1120 = vpop.f32.mrb[0].mxu0
  %1121 = vmatprep.mubr.f32.mxu0 0.0
  %1122 = vmatmul.mubr.f32.gmra.mrb[0].mxu0 %v809
  %v1123 = vpop.f32.mrb[0].mxu0
  %v1124 = vadd.f32 %v544, %v1123
  %v1125 = vpop.f32.mrb[0].mxu0
  %1126 = vmatprep.mubr.f32.mxu0 0.0
  %1127 = vmatmul.mubr.f32.gmra.mrb[0].mxu0 %v812
  %v1128 = vpop.f32.mrb[0].mxu0
  %v1129 = vadd.f32 %v549, %v1128
  %v1130 = vpop.f32.mrb[0].mxu0
  %1131 = vmatprep.mubr.f32.mxu0 0.0
  %1132 = vmatmul.mubr.f32.gmra.mrb[0].mxu0 %v815
  %v1133 = vpop.f32.mrb[0].mxu0
  %v1134 = vadd.f32 %v554, %v1133
  %v1135 = vpop.f32.mrb[0].mxu0
  %1136 = vmatprep.mubr.f32.mxu0 0.0
  %1137 = vmatmul.mubr.f32.gmra.mrb[0].mxu0 %v818
  %v1138 = vpop.f32.mrb[0].mxu0
  %v1139 = vadd.f32 %v559, %v1138
  %v1140 = vpop.f32.mrb[0].mxu0
  %1141 = vmatprep.mubr.f32.mxu0 0.0
  %1142 = vmatmul.mubr.f32.gmra.mrb[0].mxu0 %v821
  %v1143 = vpop.f32.mrb[0].mxu0
  %v1144 = vadd.f32 %v564, %v1143
  %v1145 = vpop.f32.mrb[0].mxu0
  %1146 = vmatprep.mubr.f32.mxu0 0.0
  %1147 = vmatmul.mubr.f32.gmra.mrb[0].mxu0 %v824
  %v1148 = vpop.f32.mrb[0].mxu0
  %v1149 = vadd.f32 %v569, %v1148
  %v1150 = vpop.f32.mrb[0].mxu0
  %1151 = vmatprep.mubr.f32.mxu0 0.0
  %1152 = vmatmul.mubr.f32.gmra.mrb[0].mxu0 %v827
  %v1153 = vpop.f32.mrb[0].mxu0
  %v1154 = vadd.f32 %v574, %v1153
  %v1155 = vpop.f32.mrb[0].mxu0
  %1156 = vmatprep.mubr.f32.mxu0 0.0
  %1157 = vmatmul.mubr.f32.gmra.mrb[0].mxu0 %v830
  %v1158 = vpop.f32.mrb[0].mxu0
  %v1159 = vadd.f32 %v579, %v1158
  %v1160 = vpop.f32.mrb[0].mxu0
  %1161 = vmatprep.mubr.f32.mxu0 0.0
  %1162 = vmatmul.mubr.f32.gmra.mrb[0].mxu0 %v833
  %v1163 = vpop.f32.mrb[0].mxu0
  %v1164 = vadd.f32 %v584, %v1163
  %v1165 = vpop.f32.mrb[0].mxu0
  %1166 = vmatprep.mubr.f32.mxu0 0.0
  %1167 = vmatmul.mubr.f32.gmra.mrb[0].mxu0 %v836
  %v1168 = vpop.f32.mrb[0].mxu0
  %v1169 = vadd.f32 %v589, %v1168
  %v1170 = vpop.f32.mrb[0].mxu0
  %1171 = vmatprep.mubr.f32.mxu0 0.0
  %1172 = vmatmul.mubr.f32.gmra.mrb[0].mxu0 %v839
  %v1173 = vpop.f32.mrb[0].mxu0
  %v1174 = vadd.f32 %v594, %v1173
  %v1175 = vpop.f32.mrb[0].mxu0
  %1176 = vmatprep.mubr.f32.mxu0 0.0
  %1177 = vmatmul.mubr.f32.gmra.mrb[0].mxu0 %v842
  %v1178 = vpop.f32.mrb[0].mxu0
  %v1179 = vadd.f32 %v599, %v1178
  %v1180 = vpop.f32.mrb[0].mxu0
  %1181 = vmatprep.mubr.f32.mxu0 0.0
  %1182 = vmatmul.mubr.f32.gmra.mrb[0].mxu0 %v845
  %v1183 = vpop.f32.mrb[0].mxu0
  %v1184 = vadd.f32 %v604, %v1183
  %v1185 = vpop.f32.mrb[0].mxu0
  %1186 = vmatprep.mubr.f32.mxu0 0.0
  %1187 = vmatmul.mubr.f32.gmra.mrb[0].mxu0 %v848
  %v1188 = vpop.f32.mrb[0].mxu0
  %v1189 = vadd.f32 %v609, %v1188
  %v1190 = vpop.f32.mrb[0].mxu0
  %1191 = vmatprep.mubr.f32.mxu0 0.0
  %1192 = vmatmul.mubr.f32.gmra.mrb[0].mxu0 %v851
  %v1193 = vpop.f32.mrb[0].mxu0
  %v1194 = vadd.f32 %v614, %v1193
  %v1195 = vpop.f32.mrb[0].mxu0
  %1196 = vmatprep.mubr.f32.mxu0 0.0
  %1197 = vmatmul.mubr.f32.gmra.mrb[0].mxu0 %v854
  %v1198 = vpop.f32.mrb[0].mxu0
  %v1199 = vadd.f32 %v619, %v1198
  %v1200 = vpop.f32.mrb[0].mxu0
  %1201 = vmatprep.mubr.f32.mxu0 0.0
  %1202 = vmatmul.mubr.f32.gmra.mrb[0].mxu0 %v857
  %v1203 = vpop.f32.mrb[0].mxu0
  %v1204 = vadd.f32 %v624, %v1203
  %v1205 = vpop.f32.mrb[0].mxu0
  %1206 = vmatprep.mubr.f32.mxu0 0.0
  %1207 = vmatmul.mubr.f32.gmra.mrb[0].mxu0 %v860
  %v1208 = vpop.f32.mrb[0].mxu0
  %v1209 = vadd.f32 %v629, %v1208
  %v1210 = vpop.f32.mrb[0].mxu0
  %1211 = vmatprep.mubr.f32.mxu0 0.0
  %1212 = vmatmul.mubr.f32.gmra.mrb[0].mxu0 %v863
  %v1213 = vpop.f32.mrb[0].mxu0
  %v1214 = vadd.f32 %v634, %v1213
  %v1215 = vpop.f32.mrb[0].mxu0
  %1216 = vmatprep.mubr.f32.mxu0 0.0
  %1217 = vmatmul.mubr.f32.gmra.mrb[0].mxu0 %v866
  %v1218 = vpop.f32.mrb[0].mxu0
  %v1219 = vadd.f32 %v639, %v1218
  %v1220 = vpop.f32.mrb[0].mxu0
  %1221 = vmatprep.mubr.f32.mxu0 0.0
  %1222 = vmatmul.mubr.f32.gmra.mrb[0].mxu0 %v869
  %v1223 = vpop.f32.mrb[0].mxu0
  %v1224 = vadd.f32 %v644, %v1223
  %v1225 = vpop.f32.mrb[0].mxu0
  %1226 = vmatprep.mubr.f32.mxu0 0.0
  %1227 = vmatmul.mubr.f32.gmra.mrb[0].mxu0 %v872
  %v1228 = vpop.f32.mrb[0].mxu0
  %v1229 = vadd.f32 %v649, %v1228
  %v1230 = vpop.f32.mrb[0].mxu0
  %1231 = vmatprep.mubr.f32.mxu0 0.0
  %1232 = vmatmul.mubr.f32.gmra.mrb[0].mxu0 %v875
  %v1233 = vpop.f32.mrb[0].mxu0
  %v1234 = vadd.f32 %v654, %v1233
  %v1235 = vpop.f32.mrb[0].mxu0
  %1236 = vmatprep.mubr.f32.mxu0 0.0
  %1237 = vmatmul.mubr.f32.gmra.mrb[0].mxu0 %v878
  %v1238 = vpop.f32.mrb[0].mxu0
  %v1239 = vadd.f32 %v659, %v1238
  %v1240 = vpop.f32.mrb[0].mxu0
  %1241 = vmatprep.mubr.f32.mxu0 0.0
  %1242 = vmatmul.mubr.f32.gmra.mrb[0].mxu0 %v881
  %v1243 = vpop.f32.mrb[0].mxu0
  %v1244 = vadd.f32 %v664, %v1243
  %v1245 = vpop.f32.mrb[0].mxu0
  %1246 = vmatprep.mubr.f32.mxu0 0.0
  %1247 = vmatmul.mubr.f32.gmra.mrb[0].mxu0 %v884
  %v1248 = vpop.f32.mrb[0].mxu0
  %v1249 = vadd.f32 %v669, %v1248
  %v1250 = vpop.f32.mrb[0].mxu0
  %1251 = vmatprep.mubr.f32.mxu0 0.0
  %1252 = vmatmul.mubr.f32.gmra.mrb[0].mxu0 %v887
  %v1253 = vpop.f32.mrb[0].mxu0
  %v1254 = vadd.f32 %v674, %v1253
  %v1255 = vpop.f32.mrb[0].mxu0
  %1256 = vmatprep.mubr.f32.mxu0 0.0
  %1257 = vmatmul.mubr.f32.gmra.mrb[0].mxu0 %v890
  %v1258 = vpop.f32.mrb[0].mxu0
  %v1259 = vadd.f32 %v679, %v1258
  %v1260 = vpop.f32.mrb[0].mxu0
  %1261 = vmatprep.mubr.f32.mxu0 0.0
  %1262 = vmatmul.mubr.f32.gmra.mrb[0].mxu0 %v893
  %v1263 = vpop.f32.mrb[0].mxu0
  %v1264 = vadd.f32 %v684, %v1263
  %v1265 = vpop.f32.mrb[0].mxu0
  %1266 = vmatprep.mubr.f32.mxu0 0.0
  %1267 = vmatmul.mubr.f32.gmra.mrb[0].mxu0 %v896
  %v1268 = vpop.f32.mrb[0].mxu0
  %v1269 = vadd.f32 %v689, %v1268
  %v1270 = vpop.f32.mrb[0].mxu0
  %1271 = vmatprep.mubr.f32.mxu0 0.0
  %1272 = vmatmul.mubr.f32.gmra.mrb[0].mxu0 %v899
  %v1273 = vpop.f32.mrb[0].mxu0
  %v1274 = vadd.f32 %v694, %v1273
  %v1275 = vpop.f32.mrb[0].mxu0
  %1276 = vmatprep.mubr.f32.mxu0 0.0
  %1277 = vmatmul.mubr.f32.gmra.mrb[0].mxu0 %v902
  %v1278 = vpop.f32.mrb[0].mxu0
  %v1279 = vadd.f32 %v699, %v1278
  %v1280 = vpop.f32.mrb[0].mxu0
  %1281 = vmatprep.mubr.f32.mxu0 0.0
  %1282 = vmatmul.mubr.f32.gmra.mrb[0].mxu0 %v905
  %v1283 = vpop.f32.mrb[0].mxu0
  %v1284 = vadd.f32 %v704, %v1283
  %v1285 = vpop.f32.mrb[0].mxu0
  %1286 = vmatprep.mubr.f32.mxu0 0.0
  %1287 = vmatmul.mubr.f32.gmra.mrb[0].mxu0 %v908
  %v1288 = vpop.f32.mrb[0].mxu0
  %v1289 = vadd.f32 %v709, %v1288
  %v1290 = vpop.f32.mrb[0].mxu0
  %1291 = vmatprep.mubr.f32.mxu0 0.0
  %1292 = vmatmul.mubr.f32.gmra.mrb[0].mxu0 %v911
  %v1293 = vpop.f32.mrb[0].mxu0
  %v1294 = vadd.f32 %v714, %v1293
  %v1295 = vpop.f32.mrb[0].mxu0
  %1296 = vmatprep.mubr.f32.mxu0 0.0
  %1297 = vmatmul.mubr.f32.gmra.mrb[0].mxu0 %v914
  %v1298 = vpop.f32.mrb[0].mxu0
  %v1299 = vadd.f32 %v719, %v1298
  %v1300 = vpop.f32.mrb[0].mxu0
  %1301 = vmatprep.mubr.f32.mxu0 0.0
  %1302 = vmatmul.mubr.f32.gmra.mrb[0].mxu0 %v917
  %v1303 = vpop.f32.mrb[0].mxu0
  %v1304 = vadd.f32 %v724, %v1303
  %v1305 = vpop.f32.mrb[0].mxu0
  %1306 = vdwg.mxu0
  %v1307 = vld [vmem:[%s2] sm:$0x1]
  %v1309 = vlaneseq
  %v1310 = vshrl.u32 %v1309, 7
  %v1311 = vsub.s32 0, %v1310
  %v1312 = vrot.slane %v1307, %v1311
  %v1314 = vadd.f32 %v989, %v1312
  %v1315 = vadd.f32 %v994, %v1312
  %v1316 = vadd.f32 %v999, %v1312
  %v1317 = vadd.f32 %v1004, %v1312
  %v1318 = vadd.f32 %v1009, %v1312
  %v1319 = vadd.f32 %v1014, %v1312
  %v1320 = vadd.f32 %v1019, %v1312
  %v1321 = vadd.f32 %v1024, %v1312
  %v1322 = vadd.f32 %v1029, %v1312
  %v1323 = vadd.f32 %v1034, %v1312
  %v1324 = vadd.f32 %v1039, %v1312
  %v1325 = vadd.f32 %v1044, %v1312
  %v1326 = vadd.f32 %v1049, %v1312
  %v1327 = vadd.f32 %v1054, %v1312
  %v1328 = vadd.f32 %v1059, %v1312
  %v1329 = vadd.f32 %v1064, %v1312
  %v1330 = vadd.f32 %v1069, %v1312
  %v1331 = vadd.f32 %v1074, %v1312
  %v1332 = vadd.f32 %v1079, %v1312
  %v1333 = vadd.f32 %v1084, %v1312
  %v1334 = vadd.f32 %v1089, %v1312
  %v1335 = vadd.f32 %v1094, %v1312
  %v1336 = vadd.f32 %v1099, %v1312
  %v1337 = vadd.f32 %v1104, %v1312
  %v1338 = vadd.f32 %v1109, %v1312
  %v1339 = vadd.f32 %v1114, %v1312
  %v1340 = vadd.f32 %v1119, %v1312
  %v1341 = vadd.f32 %v1124, %v1312
  %v1342 = vadd.f32 %v1129, %v1312
  %v1343 = vadd.f32 %v1134, %v1312
  %v1344 = vadd.f32 %v1139, %v1312
  %v1345 = vadd.f32 %v1144, %v1312
  %v1346 = vadd.f32 %v1149, %v1312
  %v1347 = vadd.f32 %v1154, %v1312
  %v1348 = vadd.f32 %v1159, %v1312
  %v1349 = vadd.f32 %v1164, %v1312
  %v1350 = vadd.f32 %v1169, %v1312
  %v1351 = vadd.f32 %v1174, %v1312
  %v1352 = vadd.f32 %v1179, %v1312
  %v1353 = vadd.f32 %v1184, %v1312
  %v1354 = vadd.f32 %v1189, %v1312
  %v1355 = vadd.f32 %v1194, %v1312
  %v1356 = vadd.f32 %v1199, %v1312
  %v1357 = vadd.f32 %v1204, %v1312
  %v1358 = vadd.f32 %v1209, %v1312
  %v1359 = vadd.f32 %v1214, %v1312
  %v1360 = vadd.f32 %v1219, %v1312
  %v1361 = vadd.f32 %v1224, %v1312
  %v1362 = vadd.f32 %v1229, %v1312
  %v1363 = vadd.f32 %v1234, %v1312
  %v1364 = vadd.f32 %v1239, %v1312
  %v1365 = vadd.f32 %v1244, %v1312
  %v1366 = vadd.f32 %v1249, %v1312
  %v1367 = vadd.f32 %v1254, %v1312
  %v1368 = vadd.f32 %v1259, %v1312
  %v1369 = vadd.f32 %v1264, %v1312
  %v1370 = vadd.f32 %v1269, %v1312
  %v1371 = vadd.f32 %v1274, %v1312
  %v1372 = vadd.f32 %v1279, %v1312
  %v1373 = vadd.f32 %v1284, %v1312
  %v1374 = vadd.f32 %v1289, %v1312
  %v1375 = vadd.f32 %v1294, %v1312
  %v1376 = vadd.f32 %v1299, %v1312
  %v1377 = vadd.f32 %v1304, %v1312
  %vm1378 = vcmp.ge.f32.partialorder %v1314, 0.0
  %vm1379 = vcmp.ge.f32.partialorder %v1315, 0.0
  %vm1380 = vcmp.ge.f32.partialorder %v1316, 0.0
  %vm1381 = vcmp.ge.f32.partialorder %v1317, 0.0
  %vm1382 = vcmp.ge.f32.partialorder %v1318, 0.0
  %vm1383 = vcmp.ge.f32.partialorder %v1319, 0.0
  %vm1384 = vcmp.ge.f32.partialorder %v1320, 0.0
  %vm1385 = vcmp.ge.f32.partialorder %v1321, 0.0
  %vm1386 = vcmp.ge.f32.partialorder %v1322, 0.0
  %vm1387 = vcmp.ge.f32.partialorder %v1323, 0.0
  %vm1388 = vcmp.ge.f32.partialorder %v1324, 0.0
  %vm1389 = vcmp.ge.f32.partialorder %v1325, 0.0
  %vm1390 = vcmp.ge.f32.partialorder %v1326, 0.0
  %vm1391 = vcmp.ge.f32.partialorder %v1327, 0.0
  %vm1392 = vcmp.ge.f32.partialorder %v1328, 0.0
  %vm1393 = vcmp.ge.f32.partialorder %v1329, 0.0
  %vm1394 = vcmp.ge.f32.partialorder %v1330, 0.0
  %vm1395 = vcmp.ge.f32.partialorder %v1331, 0.0
  %vm1396 = vcmp.ge.f32.partialorder %v1332, 0.0
  %vm1397 = vcmp.ge.f32.partialorder %v1333, 0.0
  %vm1398 = vcmp.ge.f32.partialorder %v1334, 0.0
  %vm1399 = vcmp.ge.f32.partialorder %v1335, 0.0
  %vm1400 = vcmp.ge.f32.partialorder %v1336, 0.0
  %vm1401 = vcmp.ge.f32.partialorder %v1337, 0.0
  %vm1402 = vcmp.ge.f32.partialorder %v1338, 0.0
  %vm1403 = vcmp.ge.f32.partialorder %v1339, 0.0
  %vm1404 = vcmp.ge.f32.partialorder %v1340, 0.0
  %vm1405 = vcmp.ge.f32.partialorder %v1341, 0.0
  %vm1406 = vcmp.ge.f32.partialorder %v1342, 0.0
  %vm1407 = vcmp.ge.f32.partialorder %v1343, 0.0
  %vm1408 = vcmp.ge.f32.partialorder %v1344, 0.0
  %vm1409 = vcmp.ge.f32.partialorder %v1345, 0.0
  %vm1410 = vcmp.ge.f32.partialorder %v1346, 0.0
  %vm1411 = vcmp.ge.f32.partialorder %v1347, 0.0
  %vm1412 = vcmp.ge.f32.partialorder %v1348, 0.0
  %vm1413 = vcmp.ge.f32.partialorder %v1349, 0.0
  %vm1414 = vcmp.ge.f32.partialorder %v1350, 0.0
  %vm1415 = vcmp.ge.f32.partialorder %v1351, 0.0
  %vm1416 = vcmp.ge.f32.partialorder %v1352, 0.0
  %vm1417 = vcmp.ge.f32.partialorder %v1353, 0.0
  %vm1418 = vcmp.ge.f32.partialorder %v1354, 0.0
  %vm1419 = vcmp.ge.f32.partialorder %v1355, 0.0
  %vm1420 = vcmp.ge.f32.partialorder %v1356, 0.0
  %vm1421 = vcmp.ge.f32.partialorder %v1357, 0.0
  %vm1422 = vcmp.ge.f32.partialorder %v1358, 0.0
  %vm1423 = vcmp.ge.f32.partialorder %v1359, 0.0
  %vm1424 = vcmp.ge.f32.partialorder %v1360, 0.0
  %vm1425 = vcmp.ge.f32.partialorder %v1361, 0.0
  %vm1426 = vcmp.ge.f32.partialorder %v1362, 0.0
  %vm1427 = vcmp.ge.f32.partialorder %v1363, 0.0
  %vm1428 = vcmp.ge.f32.partialorder %v1364, 0.0
  %vm1429 = vcmp.ge.f32.partialorder %v1365, 0.0
  %vm1430 = vcmp.ge.f32.partialorder %v1366, 0.0
  %vm1431 = vcmp.ge.f32.partialorder %v1367, 0.0
  %vm1432 = vcmp.ge.f32.partialorder %v1368, 0.0
  %vm1433 = vcmp.ge.f32.partialorder %v1369, 0.0
  %vm1434 = vcmp.ge.f32.partialorder %v1370, 0.0
  %vm1435 = vcmp.ge.f32.partialorder %v1371, 0.0
  %vm1436 = vcmp.ge.f32.partialorder %v1372, 0.0
  %vm1437 = vcmp.ge.f32.partialorder %v1373, 0.0
  %vm1438 = vcmp.ge.f32.partialorder %v1374, 0.0
  %vm1439 = vcmp.ge.f32.partialorder %v1375, 0.0
  %vm1440 = vcmp.ge.f32.partialorder %v1376, 0.0
  %vm1441 = vcmp.ge.f32.partialorder %v1377, 0.0
  %v1442 = vmul.f32 %v1314, 0.1
  %v1443 = vmul.f32 %v1315, 0.1
  %v1444 = vmul.f32 %v1316, 0.1
  %v1445 = vmul.f32 %v1317, 0.1
  %v1446 = vmul.f32 %v1318, 0.1
  %v1447 = vmul.f32 %v1319, 0.1
  %v1448 = vmul.f32 %v1320, 0.1
  %v1449 = vmul.f32 %v1321, 0.1
  %v1450 = vmul.f32 %v1322, 0.1
  %v1451 = vmul.f32 %v1323, 0.1
  %v1452 = vmul.f32 %v1324, 0.1
  %v1453 = vmul.f32 %v1325, 0.1
  %v1454 = vmul.f32 %v1326, 0.1
  %v1455 = vmul.f32 %v1327, 0.1
  %v1456 = vmul.f32 %v1328, 0.1
  %v1457 = vmul.f32 %v1329, 0.1
  %v1458 = vmul.f32 %v1330, 0.1
  %v1459 = vmul.f32 %v1331, 0.1
  %v1460 = vmul.f32 %v1332, 0.1
  %v1461 = vmul.f32 %v1333, 0.1
  %v1462 = vmul.f32 %v1334, 0.1
  %v1463 = vmul.f32 %v1335, 0.1
  %v1464 = vmul.f32 %v1336, 0.1
  %v1465 = vmul.f32 %v1337, 0.1
  %v1466 = vmul.f32 %v1338, 0.1
  %v1467 = vmul.f32 %v1339, 0.1
  %v1468 = vmul.f32 %v1340, 0.1
  %v1469 = vmul.f32 %v1341, 0.1
  %v1470 = vmul.f32 %v1342, 0.1
  %v1471 = vmul.f32 %v1343, 0.1
  %v1472 = vmul.f32 %v1344, 0.1
  %v1473 = vmul.f32 %v1345, 0.1
  %v1474 = vmul.f32 %v1346, 0.1
  %v1475 = vmul.f32 %v1347, 0.1
  %v1476 = vmul.f32 %v1348, 0.1
  %v1477 = vmul.f32 %v1349, 0.1
  %v1478 = vmul.f32 %v1350, 0.1
  %v1479 = vmul.f32 %v1351, 0.1
  %v1480 = vmul.f32 %v1352, 0.1
  %v1481 = vmul.f32 %v1353, 0.1
  %v1482 = vmul.f32 %v1354, 0.1
  %v1483 = vmul.f32 %v1355, 0.1
  %v1484 = vmul.f32 %v1356, 0.1
  %v1485 = vmul.f32 %v1357, 0.1
  %v1486 = vmul.f32 %v1358, 0.1
  %v1487 = vmul.f32 %v1359, 0.1
  %v1488 = vmul.f32 %v1360, 0.1
  %v1489 = vmul.f32 %v1361, 0.1
  %v1490 = vmul.f32 %v1362, 0.1
  %v1491 = vmul.f32 %v1363, 0.1
  %v1492 = vmul.f32 %v1364, 0.1
  %v1493 = vmul.f32 %v1365, 0.1
  %v1494 = vmul.f32 %v1366, 0.1
  %v1495 = vmul.f32 %v1367, 0.1
  %v1496 = vmul.f32 %v1368, 0.1
  %v1497 = vmul.f32 %v1369, 0.1
  %v1498 = vmul.f32 %v1370, 0.1
  %v1499 = vmul.f32 %v1371, 0.1
  %v1500 = vmul.f32 %v1372, 0.1
  %v1501 = vmul.f32 %v1373, 0.1
  %v1502 = vmul.f32 %v1374, 0.1
  %v1503 = vmul.f32 %v1375, 0.1
  %v1504 = vmul.f32 %v1376, 0.1
  %v1505 = vmul.f32 %v1377, 0.1
  %v1506 = vsel %vm1378, %v1314, %v1442
  %v1507 = vsel %vm1379, %v1315, %v1443
  %v1508 = vsel %vm1380, %v1316, %v1444
  %v1509 = vsel %vm1381, %v1317, %v1445
  %v1510 = vsel %vm1382, %v1318, %v1446
  %v1511 = vsel %vm1383, %v1319, %v1447
  %v1512 = vsel %vm1384, %v1320, %v1448
  %v1513 = vsel %vm1385, %v1321, %v1449
  %v1514 = vsel %vm1386, %v1322, %v1450
  %v1515 = vsel %vm1387, %v1323, %v1451
  %v1516 = vsel %vm1388, %v1324, %v1452
  %v1517 = vsel %vm1389, %v1325, %v1453
  %v1518 = vsel %vm1390, %v1326, %v1454
  %v1519 = vsel %vm1391, %v1327, %v1455
  %v1520 = vsel %vm1392, %v1328, %v1456
  %v1521 = vsel %vm1393, %v1329, %v1457
  %v1522 = vsel %vm1394, %v1330, %v1458
  %v1523 = vsel %vm1395, %v1331, %v1459
  %v1524 = vsel %vm1396, %v1332, %v1460
  %v1525 = vsel %vm1397, %v1333, %v1461
  %v1526 = vsel %vm1398, %v1334, %v1462
  %v1527 = vsel %vm1399, %v1335, %v1463
  %v1528 = vsel %vm1400, %v1336, %v1464
  %v1529 = vsel %vm1401, %v1337, %v1465
  %v1530 = vsel %vm1402, %v1338, %v1466
  %v1531 = vsel %vm1403, %v1339, %v1467
  %v1532 = vsel %vm1404, %v1340, %v1468
  %v1533 = vsel %vm1405, %v1341, %v1469
  %v1534 = vsel %vm1406, %v1342, %v1470
  %v1535 = vsel %vm1407, %v1343, %v1471
  %v1536 = vsel %vm1408, %v1344, %v1472
  %v1537 = vsel %vm1409, %v1345, %v1473
  %v1538 = vsel %vm1410, %v1346, %v1474
  %v1539 = vsel %vm1411, %v1347, %v1475
  %v1540 = vsel %vm1412, %v1348, %v1476
  %v1541 = vsel %vm1413, %v1349, %v1477
  %v1542 = vsel %vm1414, %v1350, %v1478
  %v1543 = vsel %vm1415, %v1351, %v1479
  %v1544 = vsel %vm1416, %v1352, %v1480
  %v1545 = vsel %vm1417, %v1353, %v1481
  %v1546 = vsel %vm1418, %v1354, %v1482
  %v1547 = vsel %vm1419, %v1355, %v1483
  %v1548 = vsel %vm1420, %v1356, %v1484
  %v1549 = vsel %vm1421, %v1357, %v1485
  %v1550 = vsel %vm1422, %v1358, %v1486
  %v1551 = vsel %vm1423, %v1359, %v1487
  %v1552 = vsel %vm1424, %v1360, %v1488
  %v1553 = vsel %vm1425, %v1361, %v1489
  %v1554 = vsel %vm1426, %v1362, %v1490
  %v1555 = vsel %vm1427, %v1363, %v1491
  %v1556 = vsel %vm1428, %v1364, %v1492
  %v1557 = vsel %vm1429, %v1365, %v1493
  %v1558 = vsel %vm1430, %v1366, %v1494
  %v1559 = vsel %vm1431, %v1367, %v1495
  %v1560 = vsel %vm1432, %v1368, %v1496
  %v1561 = vsel %vm1433, %v1369, %v1497
  %v1562 = vsel %vm1434, %v1370, %v1498
  %v1563 = vsel %vm1435, %v1371, %v1499
  %v1564 = vsel %vm1436, %v1372, %v1500
  %v1565 = vsel %vm1437, %v1373, %v1501
  %v1566 = vsel %vm1438, %v1374, %v1502
  %v1567 = vsel %vm1439, %v1375, %v1503
  %v1568 = vsel %vm1440, %v1376, %v1504
  %v1569 = vsel %vm1441, %v1377, %v1505
  %vm1570 = vcmask 261120
  %1571 = vst.msk [vmem:[%s3] sm:$0xff] %vm1570, %v1506
  %1572 = vst.msk [vmem:[%s3 + $0x8] sm:$0xff] %vm1570, %v1507
  %1573 = vst.msk [vmem:[%s3 + $0x10] sm:$0xff] %vm1570, %v1508
  %1574 = vst.msk [vmem:[%s3 + $0x18] sm:$0xff] %vm1570, %v1509
  %1575 = vst.msk [vmem:[%s3 + $0x20] sm:$0xff] %vm1570, %v1510
  %1576 = vst.msk [vmem:[%s3 + $0x28] sm:$0xff] %vm1570, %v1511
  %1577 = vst.msk [vmem:[%s3 + $0x30] sm:$0xff] %vm1570, %v1512
  %1578 = vst.msk [vmem:[%s3 + $0x38] sm:$0xff] %vm1570, %v1513
  %1579 = vst.msk [vmem:[%s3 + $0x40] sm:$0xff] %vm1570, %v1514
  %1580 = vst.msk [vmem:[%s3 + $0x48] sm:$0xff] %vm1570, %v1515
  %1581 = vst.msk [vmem:[%s3 + $0x50] sm:$0xff] %vm1570, %v1516
  %1582 = vst.msk [vmem:[%s3 + $0x58] sm:$0xff] %vm1570, %v1517
  %1583 = vst.msk [vmem:[%s3 + $0x60] sm:$0xff] %vm1570, %v1518
  %1584 = vst.msk [vmem:[%s3 + $0x68] sm:$0xff] %vm1570, %v1519
  %1585 = vst.msk [vmem:[%s3 + $0x70] sm:$0xff] %vm1570, %v1520
  %1586 = vst.msk [vmem:[%s3 + $0x78] sm:$0xff] %vm1570, %v1521
  %1587 = vst.msk [vmem:[%s3 + $0x80] sm:$0xff] %vm1570, %v1522
  %1588 = vst.msk [vmem:[%s3 + $0x88] sm:$0xff] %vm1570, %v1523
  %1589 = vst.msk [vmem:[%s3 + $0x90] sm:$0xff] %vm1570, %v1524
  %1590 = vst.msk [vmem:[%s3 + $0x98] sm:$0xff] %vm1570, %v1525
  %1591 = vst.msk [vmem:[%s3 + $0xa0] sm:$0xff] %vm1570, %v1526
  %1592 = vst.msk [vmem:[%s3 + $0xa8] sm:$0xff] %vm1570, %v1527
  %1593 = vst.msk [vmem:[%s3 + $0xb0] sm:$0xff] %vm1570, %v1528
  %1594 = vst.msk [vmem:[%s3 + $0xb8] sm:$0xff] %vm1570, %v1529
  %1595 = vst.msk [vmem:[%s3 + $0xc0] sm:$0xff] %vm1570, %v1530
  %1596 = vst.msk [vmem:[%s3 + $0xc8] sm:$0xff] %vm1570, %v1531
  %1597 = vst.msk [vmem:[%s3 + $0xd0] sm:$0xff] %vm1570, %v1532
  %1598 = vst.msk [vmem:[%s3 + $0xd8] sm:$0xff] %vm1570, %v1533
  %1599 = vst.msk [vmem:[%s3 + $0xe0] sm:$0xff] %vm1570, %v1534
  %1600 = vst.msk [vmem:[%s3 + $0xe8] sm:$0xff] %vm1570, %v1535
  %1601 = vst.msk [vmem:[%s3 + $0xf0] sm:$0xff] %vm1570, %v1536
  %1602 = vst.msk [vmem:[%s3 + $0xf8] sm:$0xff] %vm1570, %v1537
  %1603 = vst.msk [vmem:[%s3 + $0x100] sm:$0xff] %vm1570, %v1538
  %1604 = vst.msk [vmem:[%s3 + $0x108] sm:$0xff] %vm1570, %v1539
  %1605 = vst.msk [vmem:[%s3 + $0x110] sm:$0xff] %vm1570, %v1540
  %1606 = vst.msk [vmem:[%s3 + $0x118] sm:$0xff] %vm1570, %v1541
  %1607 = vst.msk [vmem:[%s3 + $0x120] sm:$0xff] %vm1570, %v1542
  %1608 = vst.msk [vmem:[%s3 + $0x128] sm:$0xff] %vm1570, %v1543
  %1609 = vst.msk [vmem:[%s3 + $0x130] sm:$0xff] %vm1570, %v1544
  %1610 = vst.msk [vmem:[%s3 + $0x138] sm:$0xff] %vm1570, %v1545
  %1611 = vst.msk [vmem:[%s3 + $0x140] sm:$0xff] %vm1570, %v1546
  %1612 = vst.msk [vmem:[%s3 + $0x148] sm:$0xff] %vm1570, %v1547
  %1613 = vst.msk [vmem:[%s3 + $0x150] sm:$0xff] %vm1570, %v1548
  %1614 = vst.msk [vmem:[%s3 + $0x158] sm:$0xff] %vm1570, %v1549
  %1615 = vst.msk [vmem:[%s3 + $0x160] sm:$0xff] %vm1570, %v1550
  %1616 = vst.msk [vmem:[%s3 + $0x168] sm:$0xff] %vm1570, %v1551
  %1617 = vst.msk [vmem:[%s3 + $0x170] sm:$0xff] %vm1570, %v1552
  %1618 = vst.msk [vmem:[%s3 + $0x178] sm:$0xff] %vm1570, %v1553
  %1619 = vst.msk [vmem:[%s3 + $0x180] sm:$0xff] %vm1570, %v1554
  %1620 = vst.msk [vmem:[%s3 + $0x188] sm:$0xff] %vm1570, %v1555
  %1621 = vst.msk [vmem:[%s3 + $0x190] sm:$0xff] %vm1570, %v1556
  %1622 = vst.msk [vmem:[%s3 + $0x198] sm:$0xff] %vm1570, %v1557
  %1623 = vst.msk [vmem:[%s3 + $0x1a0] sm:$0xff] %vm1570, %v1558
  %1624 = vst.msk [vmem:[%s3 + $0x1a8] sm:$0xff] %vm1570, %v1559
  %1625 = vst.msk [vmem:[%s3 + $0x1b0] sm:$0xff] %vm1570, %v1560
  %1626 = vst.msk [vmem:[%s3 + $0x1b8] sm:$0xff] %vm1570, %v1561
  %1627 = vst.msk [vmem:[%s3 + $0x1c0] sm:$0xff] %vm1570, %v1562
  %1628 = vst.msk [vmem:[%s3 + $0x1c8] sm:$0xff] %vm1570, %v1563
  %1629 = vst.msk [vmem:[%s3 + $0x1d0] sm:$0xff] %vm1570, %v1564
  %1630 = vst.msk [vmem:[%s3 + $0x1d8] sm:$0xff] %vm1570, %v1565
  %1631 = vst.msk [vmem:[%s3 + $0x1e0] sm:$0xff] %vm1570, %v1566
  %1632 = vst.msk [vmem:[%s3 + $0x1e8] sm:$0xff] %vm1570, %v1567
  %1633 = vst.msk [vmem:[%s3 + $0x1f0] sm:$0xff] %vm1570, %v1568
  %1634 = vst.msk [vmem:[%s3 + $0x1f8] sm:$0xff] %vm1570, %v1569
  // Predicated region
  $region14: #{tpu_custom_call.1} parent=0 // pred_check
    _
  $region15: #{tpu_custom_call.1} parent=0 // pred_check_branch
    %1636 = sbr.rel (0) target = $region17
  $region16: #{tpu_custom_call.1} parent=0 // pred_region
    _
  $region17: #{tpu_custom_call.1} parent=0 // pred_fallthru
    _
  // Predicated region
  $region18: #{tpu_custom_call.1} parent=0 // pred_check
    _
  $region19: #{tpu_custom_call.1} parent=0 // pred_check_branch
    %1638 = sbr.rel (0) target = $region21
  $region20: #{tpu_custom_call.1} parent=0 // pred_region
    _
  $region21: #{tpu_custom_call.1} parent=0 // pred_fallthru
    _

</llo_original>
